<compile_context>
chip_gen: v5e
topology: v5e:2x2
jax: 0.10.0
libtpu: 0.0.40
codegen_flags: <defaults>
</compile_context>

<pallas_src>
import jax
import jax.numpy as jnp
from jax.experimental import pallas as pl
from jax.experimental.pallas import tpu as pltpu


# ----------------------------------------------------------------------------- helpers
def _round_up(x, m):
    return ((x + m - 1) // m) * m


def _h_tile_candidates(h_pad):
    """Multiples of 128 that divide h_pad, descending."""
    n = h_pad // 128
    return [128 * d for d in range(n, 0, -1) if n % d == 0]


def _vmem_budget_bytes():
    """~80% of physical per-core VMEM: ~51 MiB on v7x, ~102 MiB on v5e/v6e."""
    try:
        phys = int(pltpu.get_tpu_info().vmem_capacity_bytes)
    except Exception:
        phys = 64 * 1024 * 1024      # conservative fallback, valid on every TPU gen
    return int(phys * 0.80)


# pl.Buffered(1) single-buffering of grid-invariant operands (weights/biases on
# path A, bd on path B).  If this Pallas/Mosaic build rejects buffer_count=1 we
# fall back once to default double-buffering and remember the decision.
_FEATURES = {"single_buffer_invariants": True}


def _call_with_buffer_fallback(run_fn):
    if _FEATURES["single_buffer_invariants"]:
        try:
            return run_fn(True)
        except Exception:
            _FEATURES["single_buffer_invariants"] = False
    return run_fn(False)


# ----------------------------------------------------------------------------- kernels
def _sae_resident_kernel(x_ref, we_ref, be_ref, wd_ref, bd_ref, o_ref):
    """Path A: 1-D grid over row tiles, full weights resident in VMEM."""
    # x_ref : (TN, F)  compute dtype (bf16 by default, cast once in the wrapper)
    # we_ref: (F, Hp)  be_ref: (1, Hp)  wd_ref: (Hp, F)  bd_ref: (1, F)
    hid = jnp.dot(x_ref[...], we_ref[...], preferred_element_type=jnp.float32)
    hid = jnp.maximum(hid + be_ref[...], 0.0)                 # bias + ReLU in f32
    # L1Penalty.apply(x, l1weight) is the identity in the forward pass.
    y = jnp.dot(hid.astype(wd_ref.dtype), wd_ref[...],
                preferred_element_type=jnp.float32)
    o_ref[...] = jax.nn.sigmoid(y + bd_ref[...]).astype(o_ref.dtype)


def _sae_tiled_kernel_acc_in_out(x_ref, we_ref, be_ref, wd_ref, bd_ref, o_ref):
    """Path B (f32 output): the resident output block doubles as the accumulator."""
    h = pl.program_id(1)

    @pl.when(h == 0)
    def _init():
        o_ref[...] = jnp.zeros_like(o_ref)

    hid = jnp.dot(x_ref[...], we_ref[...], preferred_element_type=jnp.float32)
    hid = jnp.maximum(hid + be_ref[...], 0.0)
    o_ref[...] += jnp.dot(hid.astype(wd_ref.dtype), wd_ref[...],
                          preferred_element_type=jnp.float32)

    @pl.when(h == pl.num_programs(1) - 1)
    def _finalize():
        o_ref[...] = jax.nn.sigmoid(o_ref[...] + bd_ref[...]).astype(o_ref.dtype)


def _sae_tiled_kernel_scratch(x_ref, we_ref, be_ref, wd_ref, bd_ref, o_ref, acc_ref):
    """Path B (non-f32 output): explicit f32 VMEM accumulator."""
    h = pl.program_id(1)

    @pl.when(h == 0)
    def _init():
        acc_ref[...] = jnp.zeros_like(acc_ref)

    hid = jnp.dot(x_ref[...], we_ref[...], preferred_element_type=jnp.float32)
    hid = jnp.maximum(hid + be_ref[...], 0.0)
    acc_ref[...] += jnp.dot(hid.astype(wd_ref.dtype), wd_ref[...],
                            preferred_element_type=jnp.float32)

    @pl.when(h == pl.num_programs(1) - 1)
    def _finalize():
        o_ref[...] = jax.nn.sigmoid(acc_ref[...] + bd_ref[...]).astype(o_ref.dtype)


# ----------------------------------------------------------------------------- params
def prepare_params(w_enc, b_enc, w_dec, b_dec, *, use_bf16=True):
    """One-time parameter prep (outside the per-call hot path).

    w_enc : (hidden_size, feature_size)   -- PyTorch nn.Linear convention
    b_enc : (hidden_size,)
    w_dec : (feature_size, hidden_size)
    b_dec : (feature_size,)

    Weights are transposed to (in, out), zero-padded on the hidden dim to a
    multiple of 128 lanes and (optionally) cast to bf16.  Padded encoder columns
    give relu(0)=0 and padded decoder rows are 0, so the padding is exact.
    """
    hidden_size, feature_size = w_enc.shape
    h_pad = _round_up(hidden_size, 128)
    wdt = jnp.bfloat16 if use_bf16 else jnp.float32

    we_t = jnp.zeros((feature_size, h_pad), wdt)
    we_t = we_t.at[:, :hidden_size].set(w_enc.T.astype(wdt))          # (F, Hp)
    wd_t = jnp.zeros((h_pad, feature_size), wdt)
    wd_t = wd_t.at[:hidden_size, :].set(w_dec.T.astype(wdt))          # (Hp, F)
    be = jnp.zeros((1, h_pad), jnp.float32)
    be = be.at[0, :hidden_size].set(b_enc.astype(jnp.float32))        # (1, Hp)
    bd = b_dec.astype(jnp.float32).reshape(1, feature_size)           # (1, F)

    return dict(we_t=we_t, be=be, wd_t=wd_t, bd=bd,
                feature_size=feature_size, hidden_size=hidden_size,
                hidden_padded=h_pad)


# ----------------------------------------------------------------------------- wrapper
def sparse_autoencoder_forward(x, params, *, row_tile=None, h_tile=None):
    """SparseAutoEncoder forward.  `x` may have any shape whose total size is a
    multiple of feature_size (mirrors torch .view(-1, feature_size)).

    row_tile: rows per grid step (rounded to a multiple of 8).  Defaults:
              256 (resident path) / 768 (tiled path; sweep 128/256 on v5e).
    h_tile  : hidden tile.  None or >= padded hidden -> resident-weights path
              (when it fits VMEM); smaller -> tiled (rows, hidden) path.
    """
    F = params["feature_size"]
    Hp = params["hidden_padded"]
    we_t, be, wd_t, bd = params["we_t"], params["be"], params["wd_t"], params["bd"]

    orig_shape = x.shape
    out_dtype = x.dtype
    xf = x.reshape(-1, F)                         # view(-1, feature_size)
    n_rows = xf.shape[0]

    cdt = we_t.dtype
    # Single cast at the boundary (no per-hidden-step re-cast inside the kernel;
    # a bf16 x also halves the x tile DMA + VMEM footprint).
    xf = xf.astype(cdt)

    xb = jnp.dtype(cdt).itemsize
    ob = jnp.dtype(out_dtype).itemsize
    wb = jnp.dtype(we_t.dtype).itemsize
    cap = _vmem_budget_bytes()
    margin = 4 << 20

    rows8 = _round_up(max(n_rows, 8), 8)

    # ---------------- path A: resident weights, 1-D grid -------------------------
    tn_res = min(_round_up(row_tile or 256, 8), rows8)

    def _resident_bytes(tn_):
        # conservative: assume invariants are double-buffered (pl.Buffered(1)
        # halves the weight term when supported).
        return (2 * tn_ * F * xb + 2 * tn_ * F * ob
                + 2 * (F * Hp + Hp * F) * wb
                + 2 * (Hp + F) * 4)

    use_resident = ((h_tile is None or h_tile >= Hp)
                    and _resident_bytes(tn_res) + margin <= cap)

    if use_resident:
        tn = tn_res
        grid = (pl.cdiv(n_rows, tn),)     # ragged last row block masked on writeback
        vmem_limit = min(cap, int(_resident_bytes(tn) * 1.25) + margin)
        cost = pl.CostEstimate(
            flops=int(4 * n_rows * F * Hp),                 # two matmuls, 2 flop/MAC
            transcendentals=int(n_rows * F),                # sigmoid
            bytes_accessed=int(n_rows * F * (xb + ob)       # x + out, streamed once
                               + (we_t.size + wd_t.size) * wb   # weights resident
                               + (be.size + bd.size) * 4),
        )

        def _run(single_buffer):
            def inv_spec(shape, imap):
                if single_buffer:
                    return pl.BlockSpec(shape, imap, pipeline_mode=pl.Buffered(1))
                return pl.BlockSpec(shape, imap)

            return pl.pallas_call(
                _sae_resident_kernel,
                out_shape=jax.ShapeDtypeStruct((n_rows, F), out_dtype),
                grid_spec=pltpu.PrefetchScalarGridSpec(
                    num_scalar_prefetch=0,
                    grid=grid,
                    in_specs=[
                        pl.BlockSpec((tn, F), lambda i: (i, 0)),    # x
                        inv_spec((F, Hp), lambda i: (0, 0)),        # We (resident)
                        inv_spec((1, Hp), lambda i: (0, 0)),        # be (resident)
                        inv_spec((Hp, F), lambda i: (0, 0)),        # Wd (resident)
                        inv_spec((1, F), lambda i: (0, 0)),         # bd (resident)
                    ],
                    out_specs=pl.BlockSpec((tn, F), lambda i: (i, 0)),
                ),
                compiler_params=pltpu.CompilerParams(
                    dimension_semantics=("parallel",),
                    vmem_limit_bytes=vmem_limit,
                ),
                cost_estimate=cost,
            )(xf, we_t, be, wd_t, bd)

        out = _call_with_buffer_fallback(_run)

    # ---------------- path B: tiled hidden axis (weights streamed) ---------------
    else:
        # A large row tile keeps flops/weight-byte above the HBM roofline
        # (~320 v7x, ~656 v6e).  On v5e sweep row_tile in {128, 256} instead.
        tn = min(_round_up(row_tile or 768, 8), rows8)
        target_th = max(h_tile or 512, 128)
        cands = [t for t in _h_tile_candidates(Hp) if t <= target_th] or [128]
        # NOTE: th must divide Hp (hidden was zero-padded to 128 in
        # prepare_params).  A cdiv/ragged hidden axis would read undefined VMEM
        # in the OOB weight columns, which cannot be safely masked after the
        # matmul (0 * NaN = NaN), so the divisor constraint is kept on purpose.
        th = cands[0]
        needs_scratch = out_dtype != jnp.float32

        def _tiled_bytes(tn_, th_):
            b = (2 * tn_ * F * xb + 2 * tn_ * F * ob
                 + 2 * (F * th_ + th_ * F) * wb
                 + 2 * th_ * 4 + 2 * F * 4)
            if needs_scratch:
                b += tn_ * F * 4
            return b

        while _tiled_bytes(tn, th) + margin > cap and len(cands) > 1:
            cands = cands[1:]
            th = cands[0]
        while _tiled_bytes(tn, th) + margin > cap and tn > 64:
            tn = max(64, _round_up(tn // 2, 8))
        # TODO(synk): for very wide F on v7x, additionally chunk Wd/bd/out along
        # F (hid held in a (TN, TH) scratch) instead of shrinking tn.

        n_row_tiles = -(-n_rows // tn)
        grid = (n_row_tiles, Hp // th)
        vmem_limit = min(cap, int(_tiled_bytes(tn, th) * 1.25) + margin)
        cost = pl.CostEstimate(
            flops=int(4 * n_rows * F * Hp),
            transcendentals=int(n_rows * F),
            # weights (and be) really are re-streamed once per row tile here.
            bytes_accessed=int(n_rows * F * (xb + ob)
                               + n_row_tiles * ((we_t.size + wd_t.size) * wb
                                                + be.size * 4)
                               + bd.size * 4),
        )

        kernel = _sae_tiled_kernel_scratch if needs_scratch else _sae_tiled_kernel_acc_in_out
        scratch = [pltpu.VMEM((tn, F), jnp.float32)] if needs_scratch else []

        def _run(single_buffer):
            if single_buffer:
                bd_spec = pl.BlockSpec((1, F), lambda i, h: (0, 0),
                                       pipeline_mode=pl.Buffered(1))
            else:
                bd_spec = pl.BlockSpec((1, F), lambda i, h: (0, 0))

            return pl.pallas_call(
                kernel,
                out_shape=jax.ShapeDtypeStruct((n_rows, F), out_dtype),
                grid_spec=pltpu.PrefetchScalarGridSpec(
                    num_scalar_prefetch=0,
                    grid=grid,
                    in_specs=[
                        pl.BlockSpec((tn, F), lambda i, h: (i, 0)),   # x (reused over h)
                        pl.BlockSpec((F, th), lambda i, h: (0, h)),   # We tile
                        pl.BlockSpec((1, th), lambda i, h: (0, h)),   # be tile
                        pl.BlockSpec((th, F), lambda i, h: (h, 0)),   # Wd tile
                        bd_spec,                                      # bd (grid-invariant)
                    ],
                    out_specs=pl.BlockSpec((tn, F), lambda i, h: (i, 0)),
                    scratch_shapes=scratch,
                ),
                compiler_params=pltpu.CompilerParams(
                    dimension_semantics=("parallel", "arbitrary"),
                    vmem_limit_bytes=vmem_limit,
                ),
                cost_estimate=cost,
            )(xf, we_t, be, wd_t, bd)

        out = _call_with_buffer_fallback(_run)

    return out.reshape(orig_shape)                # view_as(input)


# ----------------------------------------------------------------------------- reference
def _reference(x, w_enc, b_enc, w_dec, b_dec, feature_size):
    xf = x.reshape(-1, feature_size).astype(jnp.float32)
    h = jnp.maximum(xf @ w_enc.T + b_enc, 0.0)
    y = jax.nn.sigmoid(h @ w_dec.T + b_dec)
    return y.reshape(x.shape)


def _make_params(key, feature_size, hidden_size):
    k_we, k_be, k_wd, k_bd = jax.random.split(key, 4)
    bound_e = 1.0 / (feature_size ** 0.5)
    bound_d = 1.0 / (hidden_size ** 0.5)
    w_enc = jax.random.uniform(k_we, (hidden_size, feature_size),
                               minval=-bound_e, maxval=bound_e, dtype=jnp.float32)
    b_enc = jax.random.uniform(k_be, (hidden_size,),
                               minval=-bound_e, maxval=bound_e, dtype=jnp.float32)
    w_dec = jax.random.uniform(k_wd, (feature_size, hidden_size),
                               minval=-bound_d, maxval=bound_d, dtype=jnp.float32)
    b_dec = jax.random.uniform(k_bd, (feature_size,),
                               minval=-bound_d, maxval=bound_d, dtype=jnp.float32)
    return w_enc, b_enc, w_dec, b_dec


if __name__ == "__main__":
    # --- check 1: resident-weights path, single row tile -------------------------
    feature_size = 128
    hidden_size = 32
    l1weight = 0.1        # only affects backward; forward is identity through L1Penalty

    key = jax.random.PRNGKey(0)
    k_x, k_p, k_x3, k_p3 = jax.random.split(key, 4)
    x = jax.random.normal(k_x, (2, 4, 16, feature_size), dtype=jnp.float32)  # 128 rows
    w_enc, b_enc, w_dec, b_dec = _make_params(k_p, feature_size, hidden_size)
    params = prepare_params(w_enc, b_enc, w_dec, b_dec, use_bf16=True)

    out = jax.block_until_ready(sparse_autoencoder_forward(x, params))
    ref = _reference(x, w_enc, b_enc, w_dec, b_dec, feature_size)
    assert out.shape == x.shape
    err = float(jnp.max(jnp.abs(out - ref)))
    assert jnp.allclose(out, ref, atol=2e-2, rtol=2e-2), f"check1 mismatch (max err {err})"

    # --- check 2: tiled-hidden fallback (2 hidden tiles, ragged last row tile),
    #     hidden padded 200 -> 256, accumulation directly in the f32 output block --
    feature_size2, hidden_size2 = 256, 200
    key2 = jax.random.PRNGKey(1)
    k_x2, k_p2 = jax.random.split(key2, 2)
    x2 = jax.random.normal(k_x2, (3, 40, feature_size2), dtype=jnp.float32)  # 120 rows
    w_enc2, b_enc2, w_dec2, b_dec2 = _make_params(k_p2, feature_size2, hidden_size2)
    params2 = prepare_params(w_enc2, b_enc2, w_dec2, b_dec2, use_bf16=True)

    out2 = jax.block_until_ready(
        sparse_autoencoder_forward(x2, params2, row_tile=48, h_tile=128))
    ref2 = _reference(x2, w_enc2, b_enc2, w_dec2, b_dec2, feature_size2)
    assert out2.shape == x2.shape
    err2 = float(jnp.max(jnp.abs(out2 - ref2)))
    assert jnp.allclose(out2, ref2, atol=2e-2, rtol=2e-2), f"check2 mismatch (max err {err2})"

    # --- check 3: resident path with several row tiles + ragged last row block ---
    feature_size3, hidden_size3 = 128, 96
    x3 = jax.random.normal(k_x3, (5, 40, feature_size3), dtype=jnp.float32)   # 200 rows
    w_enc3, b_enc3, w_dec3, b_dec3 = _make_params(k_p3, feature_size3, hidden_size3)
    params3 = prepare_params(w_enc3, b_enc3, w_dec3, b_dec3, use_bf16=True)

    out3 = jax.block_until_ready(
        sparse_autoencoder_forward(x3, params3, row_tile=64))
    ref3 = _reference(x3, w_enc3, b_enc3, w_dec3, b_dec3, feature_size3)
    assert out3.shape == x3.shape
    err3 = float(jnp.max(jnp.abs(out3 - ref3)))
    assert jnp.allclose(out3, ref3, atol=2e-2, rtol=2e-2), f"check3 mismatch (max err {err3})"

    print("KERNEL_OK")
</pallas_src>

<mosaic_0001>
module attributes {stable_mosaic.version = 11 : i64} {
  func.func @_sae_resident_kernel(%arg0: i32, %arg1: memref<128x128xbf16, #tpu.memory_space<vmem>>, %arg2: memref<128x128xbf16, #tpu.memory_space<vmem>>, %arg3: memref<1x128xf32, #tpu.memory_space<vmem>>, %arg4: memref<128x128xbf16, #tpu.memory_space<vmem>>, %arg5: memref<1x128xf32, #tpu.memory_space<vmem>>, %arg6: memref<128x128xf32, #tpu.memory_space<vmem>>) attributes {dimension_semantics = [#tpu.dimension_semantics<parallel>], iteration_bounds = array<i64: 1>, scalar_prefetch = 0 : i64, scratch_operands = 0 : i64, tpu.core_type = #tpu.core_type<tc>, window_params = [{transform_indices = @transform_0, window_bounds = array<i64: 128, 128>}, {pipeline_mode = #tpu.pipeline_mode<synchronous>, transform_indices = @transform_1, window_bounds = array<i64: 128, 128>}, {pipeline_mode = #tpu.pipeline_mode<synchronous>, transform_indices = @transform_2, window_bounds = array<i64: 1, 128>}, {pipeline_mode = #tpu.pipeline_mode<synchronous>, transform_indices = @transform_3, window_bounds = array<i64: 128, 128>}, {pipeline_mode = #tpu.pipeline_mode<synchronous>, transform_indices = @transform_4, window_bounds = array<i64: 1, 128>}, {transform_indices = @transform_5, window_bounds = array<i64: 128, 128>}]} {
    %c0 = arith.constant 0 : index
    %c0_0 = arith.constant 0 : index
    %0 = vector.load %arg1[%c0, %c0_0] : memref<128x128xbf16, #tpu.memory_space<vmem>>, vector<128x128xbf16>
    %c0_1 = arith.constant 0 : index
    %c0_2 = arith.constant 0 : index
    %1 = vector.load %arg2[%c0_1, %c0_2] : memref<128x128xbf16, #tpu.memory_space<vmem>>, vector<128x128xbf16>
    %cst = arith.constant dense<0.000000e+00> : vector<128x128xf32>
    %2 = tpu.matmul %0, %1, %cst {dimension_numbers = #tpu.dot_dimension_numbers<[1], [0], [0], [1], [0, 0, 1, 1], [], []>} : vector<128x128xbf16>, vector<128x128xbf16>, vector<128x128xf32> -> vector<128x128xf32>
    %c0_3 = arith.constant 0 : index
    %c0_4 = arith.constant 0 : index
    %3 = vector.load %arg3[%c0_3, %c0_4] : memref<1x128xf32, #tpu.memory_space<vmem>>, vector<1x128xf32>
    %4 = vector.broadcast %3 : vector<1x128xf32> to vector<128x128xf32>
    %5 = arith.addf %2, %4 : vector<128x128xf32>
    %cst_5 = arith.constant 0.000000e+00 : f32
    %6 = vector.broadcast %cst_5 : f32 to vector<128x128xf32>
    %7 = arith.maximumf %5, %6 : vector<128x128xf32>
    %8 = arith.truncf %7 : vector<128x128xf32> to vector<128x128xbf16>
    %c0_6 = arith.constant 0 : index
    %c0_7 = arith.constant 0 : index
    %9 = vector.load %arg4[%c0_6, %c0_7] : memref<128x128xbf16, #tpu.memory_space<vmem>>, vector<128x128xbf16>
    %cst_8 = arith.constant dense<0.000000e+00> : vector<128x128xf32>
    %10 = tpu.matmul %8, %9, %cst_8 {dimension_numbers = #tpu.dot_dimension_numbers<[1], [0], [0], [1], [0, 0, 1, 1], [], []>} : vector<128x128xbf16>, vector<128x128xbf16>, vector<128x128xf32> -> vector<128x128xf32>
    %c0_9 = arith.constant 0 : index
    %c0_10 = arith.constant 0 : index
    %11 = vector.load %arg5[%c0_9, %c0_10] : memref<1x128xf32, #tpu.memory_space<vmem>>, vector<1x128xf32>
    %12 = vector.broadcast %11 : vector<1x128xf32> to vector<128x128xf32>
    %13 = arith.addf %10, %12 : vector<128x128xf32>
    %14 = arith.negf %13 : vector<128x128xf32>
    %15 = math.exp %14 : vector<128x128xf32>
    %cst_11 = arith.constant 1.000000e+00 : f32
    %16 = vector.broadcast %cst_11 : f32 to vector<128x128xf32>
    %17 = arith.addf %16, %15 : vector<128x128xf32>
    %18 = arith.divf %16, %17 : vector<128x128xf32>
    %c0_12 = arith.constant 0 : index
    %c0_13 = arith.constant 0 : index
    %19 = vector.load %arg6[%c0_12, %c0_13] : memref<128x128xf32, #tpu.memory_space<vmem>>, vector<128x128xf32>
    tpu.vector_store %arg6[%c0_12, %c0_13], %18 {strides = array<i32>} : memref<128x128xf32, #tpu.memory_space<vmem>>, vector<128x128xf32>,
    return
  }
  func.func @transform_0(%arg0: i32) -> (i32, i32) {
    %c0_i32 = arith.constant 0 : i32
    %c0_i32_0 = arith.constant 0 : i32
    return %arg0, %c0_i32 : i32, i32
  }
  func.func @transform_1(%arg0: i32) -> (i32, i32) {
    %c0_i32 = arith.constant 0 : i32
    %c0_i32_0 = arith.constant 0 : i32
    %c0_i32_1 = arith.constant 0 : i32
    return %c0_i32, %c0_i32_0 : i32, i32
  }
  func.func @transform_2(%arg0: i32) -> (i32, i32) {
    %c0_i32 = arith.constant 0 : i32
    %c0_i32_0 = arith.constant 0 : i32
    %c0_i32_1 = arith.constant 0 : i32
    return %c0_i32, %c0_i32_0 : i32, i32
  }
  func.func @transform_3(%arg0: i32) -> (i32, i32) {
    %c0_i32 = arith.constant 0 : i32
    %c0_i32_0 = arith.constant 0 : i32
    %c0_i32_1 = arith.constant 0 : i32
    return %c0_i32, %c0_i32_0 : i32, i32
  }
  func.func @transform_4(%arg0: i32) -> (i32, i32) {
    %c0_i32 = arith.constant 0 : i32
    %c0_i32_0 = arith.constant 0 : i32
    %c0_i32_1 = arith.constant 0 : i32
    return %c0_i32, %c0_i32_0 : i32, i32
  }
  func.func @transform_5(%arg0: i32) -> (i32, i32) {
    %c0_i32 = arith.constant 0 : i32
    %c0_i32_0 = arith.constant 0 : i32
    return %arg0, %c0_i32 : i32, i32
  }
}

module attributes {stable_mosaic.version = 11 : i64} {
  func.func @_sae_resident_kernel(%arg0: i32, %arg1: memref<128x128xbf16, #tpu.memory_space<vmem>>, %arg2: memref<128x128xbf16, #tpu.memory_space<vmem>>, %arg3: memref<1x128xf32, #tpu.memory_space<vmem>>, %arg4: memref<128x128xbf16, #tpu.memory_space<vmem>>, %arg5: memref<1x128xf32, #tpu.memory_space<vmem>>, %arg6: memref<128x128xf32, #tpu.memory_space<vmem>>) attributes {dimension_semantics = [#tpu.dimension_semantics<parallel>], iteration_bounds = array<i64: 1>, scalar_prefetch = 0 : i64, scratch_operands = 0 : i64, tpu.core_type = #tpu.core_type<tc>, window_params = [{transform_indices = @transform_0, window_bounds = array<i64: 128, 128>}, {pipeline_mode = #tpu.pipeline_mode<synchronous>, transform_indices = @transform_1, window_bounds = array<i64: 128, 128>}, {pipeline_mode = #tpu.pipeline_mode<synchronous>, transform_indices = @transform_2, window_bounds = array<i64: 1, 128>}, {pipeline_mode = #tpu.pipeline_mode<synchronous>, transform_indices = @transform_3, window_bounds = array<i64: 128, 128>}, {pipeline_mode = #tpu.pipeline_mode<synchronous>, transform_indices = @transform_4, window_bounds = array<i64: 1, 128>}, {transform_indices = @transform_5, window_bounds = array<i64: 128, 128>}]} {
    %c0 = arith.constant 0 : index
    %c0_0 = arith.constant 0 : index
    %0 = vector.load %arg1[%c0, %c0_0] : memref<128x128xbf16, #tpu.memory_space<vmem>>, vector<128x128xbf16>
    %c0_1 = arith.constant 0 : index
    %c0_2 = arith.constant 0 : index
    %1 = vector.load %arg2[%c0_1, %c0_2] : memref<128x128xbf16, #tpu.memory_space<vmem>>, vector<128x128xbf16>
    %cst = arith.constant dense<0.000000e+00> : vector<128x128xf32>
    %2 = tpu.matmul %0, %1, %cst {dimension_numbers = #tpu.dot_dimension_numbers<[1], [0], [0], [1], [0, 0, 1, 1], [], []>} : vector<128x128xbf16>, vector<128x128xbf16>, vector<128x128xf32> -> vector<128x128xf32>
    %c0_3 = arith.constant 0 : index
    %c0_4 = arith.constant 0 : index
    %3 = vector.load %arg3[%c0_3, %c0_4] : memref<1x128xf32, #tpu.memory_space<vmem>>, vector<1x128xf32>
    %4 = vector.broadcast %3 : vector<1x128xf32> to vector<128x128xf32>
    %5 = arith.addf %2, %4 : vector<128x128xf32>
    %cst_5 = arith.constant 0.000000e+00 : f32
    %6 = vector.broadcast %cst_5 : f32 to vector<128x128xf32>
    %7 = arith.maximumf %5, %6 : vector<128x128xf32>
    %8 = arith.truncf %7 : vector<128x128xf32> to vector<128x128xbf16>
    %c0_6 = arith.constant 0 : index
    %c0_7 = arith.constant 0 : index
    %9 = vector.load %arg4[%c0_6, %c0_7] : memref<128x128xbf16, #tpu.memory_space<vmem>>, vector<128x128xbf16>
    %cst_8 = arith.constant dense<0.000000e+00> : vector<128x128xf32>
    %10 = tpu.matmul %8, %9, %cst_8 {dimension_numbers = #tpu.dot_dimension_numbers<[1], [0], [0], [1], [0, 0, 1, 1], [], []>} : vector<128x128xbf16>, vector<128x128xbf16>, vector<128x128xf32> -> vector<128x128xf32>
    %c0_9 = arith.constant 0 : index
    %c0_10 = arith.constant 0 : index
    %11 = vector.load %arg5[%c0_9, %c0_10] : memref<1x128xf32, #tpu.memory_space<vmem>>, vector<1x128xf32>
    %12 = vector.broadcast %11 : vector<1x128xf32> to vector<128x128xf32>
    %13 = arith.addf %10, %12 : vector<128x128xf32>
    %14 = arith.negf %13 : vector<128x128xf32>
    %15 = math.exp %14 : vector<128x128xf32>
    %cst_11 = arith.constant 1.000000e+00 : f32
    %16 = vector.broadcast %cst_11 : f32 to vector<128x128xf32>
    %17 = arith.addf %16, %15 : vector<128x128xf32>
    %18 = arith.divf %16, %17 : vector<128x128xf32>
    %c0_12 = arith.constant 0 : index
    %c0_13 = arith.constant 0 : index
    %19 = vector.load %arg6[%c0_12, %c0_13] : memref<128x128xf32, #tpu.memory_space<vmem>>, vector<128x128xf32>
    tpu.vector_store %arg6[%c0_12, %c0_13], %18 {strides = array<i32>} : memref<128x128xf32, #tpu.memory_space<vmem>>, vector<128x128xf32>,
    return
  }
  func.func @transform_0(%arg0: i32) -> (i32, i32) {
    %c0_i32 = arith.constant 0 : i32
    %c0_i32_0 = arith.constant 0 : i32
    return %arg0, %c0_i32 : i32, i32
  }
  func.func @transform_1(%arg0: i32) -> (i32, i32) {
    %c0_i32 = arith.constant 0 : i32
    %c0_i32_0 = arith.constant 0 : i32
    %c0_i32_1 = arith.constant 0 : i32
    return %c0_i32, %c0_i32_0 : i32, i32
  }
  func.func @transform_2(%arg0: i32) -> (i32, i32) {
    %c0_i32 = arith.constant 0 : i32
    %c0_i32_0 = arith.constant 0 : i32
    %c0_i32_1 = arith.constant 0 : i32
    return %c0_i32, %c0_i32_0 : i32, i32
  }
  func.func @transform_3(%arg0: i32) -> (i32, i32) {
    %c0_i32 = arith.constant 0 : i32
    %c0_i32_0 = arith.constant 0 : i32
    %c0_i32_1 = arith.constant 0 : i32
    return %c0_i32, %c0_i32_0 : i32, i32
  }
  func.func @transform_4(%arg0: i32) -> (i32, i32) {
    %c0_i32 = arith.constant 0 : i32
    %c0_i32_0 = arith.constant 0 : i32
    %c0_i32_1 = arith.constant 0 : i32
    return %c0_i32, %c0_i32_0 : i32, i32
  }
  func.func @transform_5(%arg0: i32) -> (i32, i32) {
    %c0_i32 = arith.constant 0 : i32
    %c0_i32_0 = arith.constant 0 : i32
    return %arg0, %c0_i32 : i32, i32
  }
}

</mosaic_0001>

<llo_original>
// kernel: tpu_custom_call.1
$region0: #{tpu_custom_call.1}
  #allocation0 [shape = 'u32[]', space=smem, size = 0x4, offset = 0x4, fixed_abs, tag = 'smem constant byte address 0x4 - core index']
  #allocation1 [shape = 'u32[72,128]{1,0:T(1,128)}', space=vmem, size = 0x9000, scoped, tag = 'internal scratch']
  %s0 = inlined_call_operand.hbm [shape: bf16[128,128], index: 0, kind: input, shape index: {}]
  %s1 = inlined_call_operand.hbm [shape: bf16[128,128], index: 1, kind: input, shape index: {}]
  %s2 = inlined_call_operand.vmem [shape: f32[1,128], index: 2, kind: input, shape index: {}]
  %s3 = inlined_call_operand.hbm [shape: bf16[128,128], index: 3, kind: input, shape index: {}]
  %s4 = inlined_call_operand.vmem [shape: f32[1,128], index: 4, kind: input, shape index: {}]
  %s5 = inlined_call_operand.hbm [shape: f32[128,128], index: 5, kind: output, shape index: {}]
  %s6 = sld [smem:[#allocation0]]
  $region42: #{tpu_custom_call.1} parent=0
    _
  %s8 = ssub.s32 1, %s6
  %s9 = scalar_select 0, %s8, %s6
  $region1: #{tpu_custom_call.1} parent=0
    #allocation2 [shape = 'u8[32768]{0}', space=vmem, size = 0x8000, scoped, tag = 'input window, operand 0, single buffered']
    #allocation3 [shape = 's32[1]{0}', space=sflag, size = 0x4, scoped, tag = 'scoped memory for tpu_custom_call.1']
    #allocation4 [shape = 's32[1]{0}', space=sflag, size = 0x4, scoped, tag = 'scoped memory for tpu_custom_call.1']
    #allocation5 [shape = 'u8[32768]{0}', space=vmem, size = 0x8000, scoped, tag = 'input window, operand 1, single buffered']
    #allocation6 [shape = 's32[1]{0}', space=sflag, size = 0x4, scoped, tag = 'scoped memory for tpu_custom_call.1']
    #allocation7 [shape = 'u8[32768]{0}', space=vmem, size = 0x8000, scoped, tag = 'input window, operand 3, single buffered']
    #allocation8 [shape = 'u8[65536]{0}', space=vmem, size = 0x10000, scoped, tag = 'output window, operand 0, single buffered']
    %10 = vsyncpa [#allocation3], 0
    %11 = vsyncpa [#allocation6], 0
    %12 = vsyncpa [#allocation4], 0
    // Predicated region
    $region2: #{tpu_custom_call.1} parent=1 // pred_check
      _
    $region3: #{tpu_custom_call.1} parent=1 // pred_check_branch
      %14 = sbr.rel (0) target = $region5
    $region4: #{tpu_custom_call.1} parent=1 // pred_region
      %16 = vsyncadd [#allocation3], 0
      %s17 = sshll.u32 %s0, 4
      %s18 = int_to_ptr.hbm [resolvable:$true] %s17
      %s19 = sshll.u32 [#allocation2], 4
      %s20 = int_to_ptr.vmem [resolvable:$true] %s19
      %25 = dma.hbm_to_vmem [thread:$0]  %s18, 1024, %s20, [#allocation3], 64, 64, 4
    $region5: #{tpu_custom_call.1} parent=1 // pred_fallthru
      _
    // Predicated region
    $region6: #{tpu_custom_call.1} parent=1 // pred_check
      _
    $region7: #{tpu_custom_call.1} parent=1 // pred_check_branch
      %27 = sbr.rel (0) target = $region9
    $region8: #{tpu_custom_call.1} parent=1 // pred_region
      %29 = vsyncadd [#allocation6], 0
      %s30 = sshll.u32 %s1, 4
      %s31 = int_to_ptr.hbm [resolvable:$true] %s30
      %s32 = sshll.u32 [#allocation5], 4
      %s33 = int_to_ptr.vmem [resolvable:$true] %s32
      %38 = dma.hbm_to_vmem [thread:$0]  %s31, 1024, %s33, [#allocation6], 64, 64, 4
    $region9: #{tpu_custom_call.1} parent=1 // pred_fallthru
      _
    // Predicated region
    $region10: #{tpu_custom_call.1} parent=1 // pred_check
      _
    $region11: #{tpu_custom_call.1} parent=1 // pred_check_branch
      %40 = sbr.rel (0) target = $region13
    $region12: #{tpu_custom_call.1} parent=1 // pred_region
      _
    $region13: #{tpu_custom_call.1} parent=1 // pred_fallthru
      _
    // Predicated region
    $region14: #{tpu_custom_call.1} parent=1 // pred_check
      _
    $region15: #{tpu_custom_call.1} parent=1 // pred_check_branch
      %42 = sbr.rel (0) target = $region17
    $region16: #{tpu_custom_call.1} parent=1 // pred_region
      %44 = vsyncadd [#allocation6], 0
      %s45 = sshll.u32 %s3, 4
      %s46 = int_to_ptr.hbm [resolvable:$true] %s45
      %s47 = sshll.u32 [#allocation7], 4
      %s48 = int_to_ptr.vmem [resolvable:$true] %s47
      %53 = dma.hbm_to_vmem [thread:$0]  %s46, 1024, %s48, [#allocation6], 64, 64, 4
    $region17: #{tpu_custom_call.1} parent=1 // pred_fallthru
      _
    // Predicated region
    $region18: #{tpu_custom_call.1} parent=1 // pred_check
      _
    $region19: #{tpu_custom_call.1} parent=1 // pred_check_branch
      %55 = sbr.rel (0) target = $region21
    $region20: #{tpu_custom_call.1} parent=1 // pred_region
      _
    $region21: #{tpu_custom_call.1} parent=1 // pred_fallthru
      _
    // Predicated region
    $region22: #{tpu_custom_call.1} parent=1 // pred_check
      _
    $region23: #{tpu_custom_call.1} parent=1 // pred_check_branch
      %57 = sbr.rel (0) target = $region25
    $region24: #{tpu_custom_call.1} parent=1 // pred_region
      %59 = dma.done [#allocation3], 1024
    $region25: #{tpu_custom_call.1} parent=1 // pred_fallthru
      _
    // Predicated region
    $region26: #{tpu_custom_call.1} parent=1 // pred_check
      _
    $region27: #{tpu_custom_call.1} parent=1 // pred_check_branch
      %61 = sbr.rel (0) target = $region29
    $region28: #{tpu_custom_call.1} parent=1 // pred_region
      %63 = dma.done [#allocation6], 1024
    $region29: #{tpu_custom_call.1} parent=1 // pred_fallthru
      _
    // Predicated region
    $region30: #{tpu_custom_call.1} parent=1 // pred_check
      _
    $region31: #{tpu_custom_call.1} parent=1 // pred_check_branch
      %65 = sbr.rel (0) target = $region33
    $region32: #{tpu_custom_call.1} parent=1 // pred_region
      %67 = dma.done [#allocation6], 1024
    $region33: #{tpu_custom_call.1} parent=1 // pred_fallthru
      _
    %v68 = vld [vmem:[#allocation2] sm:$0xf]
    %v69 = vld [vmem:[#allocation2 + $0x4] sm:$0xf]
    %v70 = vld [vmem:[#allocation2 + $0x8] sm:$0xf]
    %v71 = vld [vmem:[#allocation2 + $0xc] sm:$0xf]
    %v72 = vld [vmem:[#allocation2 + $0x10] sm:$0xf]
    %v73 = vld [vmem:[#allocation2 + $0x14] sm:$0xf]
    %v74 = vld [vmem:[#allocation2 + $0x18] sm:$0xf]
    %v75 = vld [vmem:[#allocation2 + $0x1c] sm:$0xf]
    %v76 = vld [vmem:[#allocation2 + $0x20] sm:$0xf]
    %v77 = vld [vmem:[#allocation2 + $0x24] sm:$0xf]
    %v78 = vld [vmem:[#allocation2 + $0x28] sm:$0xf]
    %v79 = vld [vmem:[#allocation2 + $0x2c] sm:$0xf]
    %v80 = vld [vmem:[#allocation2 + $0x30] sm:$0xf]
    %v81 = vld [vmem:[#allocation2 + $0x34] sm:$0xf]
    %v82 = vld [vmem:[#allocation2 + $0x38] sm:$0xf]
    %v83 = vld [vmem:[#allocation2 + $0x3c] sm:$0xf]
    %v84 = vld [vmem:[#allocation5] sm:$0xf]
    %v85 = vld [vmem:[#allocation5 + $0x4] sm:$0xf]
    %v86 = vld [vmem:[#allocation5 + $0x8] sm:$0xf]
    %v87 = vld [vmem:[#allocation5 + $0xc] sm:$0xf]
    %v88 = vld [vmem:[#allocation5 + $0x10] sm:$0xf]
    %v89 = vld [vmem:[#allocation5 + $0x14] sm:$0xf]
    %v90 = vld [vmem:[#allocation5 + $0x18] sm:$0xf]
    %v91 = vld [vmem:[#allocation5 + $0x1c] sm:$0xf]
    %v92 = vld [vmem:[#allocation5 + $0x20] sm:$0xf]
    %v93 = vld [vmem:[#allocation5 + $0x24] sm:$0xf]
    %v94 = vld [vmem:[#allocation5 + $0x28] sm:$0xf]
    %v95 = vld [vmem:[#allocation5 + $0x2c] sm:$0xf]
    %v96 = vld [vmem:[#allocation5 + $0x30] sm:$0xf]
    %v97 = vld [vmem:[#allocation5 + $0x34] sm:$0xf]
    %v98 = vld [vmem:[#allocation5 + $0x38] sm:$0xf]
    %v99 = vld [vmem:[#allocation5 + $0x3c] sm:$0xf]
    %v100 = vld [vmem:[%s2] sm:$0x1]
    %v102 = vperm.slane %v100, 0
    %v120 = vunpack.c.l.b16 %v68
    %v121 = vunpack.c.l.b16 %v69
    %v122 = vunpack.c.l.b16 %v70
    %v123 = vunpack.c.l.b16 %v71
    %v124 = vunpack.c.l.b16 %v72
    %v125 = vunpack.c.l.b16 %v73
    %v126 = vunpack.c.l.b16 %v74
    %v127 = vunpack.c.l.b16 %v75
    %v128 = vunpack.c.l.b16 %v76
    %v129 = vunpack.c.l.b16 %v77
    %v130 = vunpack.c.l.b16 %v78
    %v131 = vunpack.c.l.b16 %v79
    %v132 = vunpack.c.l.b16 %v80
    %v133 = vunpack.c.l.b16 %v81
    %v134 = vunpack.c.l.b16 %v82
    %v135 = vunpack.c.l.b16 %v83
    %v136 = vpack.c.b16 %v121, %v120
    %v137 = vpack.c.b16 %v123, %v122
    %v138 = vpack.c.b16 %v125, %v124
    %v139 = vpack.c.b16 %v127, %v126
    %v140 = vpack.c.b16 %v129, %v128
    %v141 = vpack.c.b16 %v131, %v130
    %v142 = vpack.c.b16 %v133, %v132
    %v143 = vpack.c.b16 %v135, %v134
    %v168 = vunpack.c.l.b16 %v84
    %v169 = vunpack.c.l.b16 %v85
    %v170 = vunpack.c.l.b16 %v86
    %v171 = vunpack.c.l.b16 %v87
    %v172 = vunpack.c.l.b16 %v88
    %v173 = vunpack.c.l.b16 %v89
    %v174 = vunpack.c.l.b16 %v90
    %v175 = vunpack.c.l.b16 %v91
    %v176 = vunpack.c.l.b16 %v92
    %v177 = vunpack.c.l.b16 %v93
    %v178 = vunpack.c.l.b16 %v94
    %v179 = vunpack.c.l.b16 %v95
    %v180 = vunpack.c.l.b16 %v96
    %v181 = vunpack.c.l.b16 %v97
    %v182 = vunpack.c.l.b16 %v98
    %v183 = vunpack.c.l.b16 %v99
    %v184 = vpack.c.b16 %v169, %v168
    %v185 = vpack.c.b16 %v171, %v170
    %v186 = vpack.c.b16 %v173, %v172
    %v187 = vpack.c.b16 %v175, %v174
    %v188 = vpack.c.b16 %v177, %v176
    %v189 = vpack.c.b16 %v179, %v178
    %v190 = vpack.c.b16 %v181, %v180
    %v191 = vpack.c.b16 %v183, %v182
    %200 = vmatpush.bf16.msra.mxu0 %v191
    %201 = vmatpush.bf16.msra.mxu0 %v190
    %202 = vmatpush.bf16.msra.mxu0 %v189
    %203 = vmatpush.bf16.msra.mxu0 %v188
    %204 = vmatpush.bf16.msra.mxu0 %v187
    %205 = vmatpush.bf16.msra.mxu0 %v186
    %206 = vmatpush.bf16.msra.mxu0 %v185
    %207 = vmatpush.bf16.msra.mxu0 %v184
    %208 = vmatmul.bf16.gmra.mxu0 %v136
    %v209 = vpop.f32.mrf.mxu0
    %v210 = vadd.f32 %v102, %v209
    %v211 = vpop.f32.mrf.mxu0
    %v212 = vadd.f32 %v102, %v211
    %213 = vmatmul.bf16.gmra.mxu0 %v137
    %v214 = vpop.f32.mrf.mxu0
    %v215 = vadd.f32 %v102, %v214
    %v216 = vpop.f32.mrf.mxu0
    %v217 = vadd.f32 %v102, %v216
    %218 = vmatmul.bf16.gmra.mxu0 %v138
    %v219 = vpop.f32.mrf.mxu0
    %v220 = vadd.f32 %v102, %v219
    %v221 = vpop.f32.mrf.mxu0
    %v222 = vadd.f32 %v102, %v221
    %223 = vmatmul.bf16.gmra.mxu0 %v139
    %v224 = vpop.f32.mrf.mxu0
    %v225 = vadd.f32 %v102, %v224
    %v226 = vpop.f32.mrf.mxu0
    %v227 = vadd.f32 %v102, %v226
    %228 = vmatmul.bf16.gmra.mxu0 %v140
    %v229 = vpop.f32.mrf.mxu0
    %v230 = vadd.f32 %v102, %v229
    %v231 = vpop.f32.mrf.mxu0
    %v232 = vadd.f32 %v102, %v231
    %233 = vmatmul.bf16.gmra.mxu0 %v141
    %v234 = vpop.f32.mrf.mxu0
    %v235 = vadd.f32 %v102, %v234
    %v236 = vpop.f32.mrf.mxu0
    %v237 = vadd.f32 %v102, %v236
    %238 = vmatmul.bf16.gmra.mxu0 %v142
    %v239 = vpop.f32.mrf.mxu0
    %v240 = vadd.f32 %v102, %v239
    %v241 = vpop.f32.mrf.mxu0
    %v242 = vadd.f32 %v102, %v241
    %243 = vmatmul.bf16.gmra.mxu0 %v143
    %v244 = vpop.f32.mrf.mxu0
    %v245 = vadd.f32 %v102, %v244
    %v246 = vpop.f32.mrf.mxu0
    %v247 = vadd.f32 %v102, %v246
    %248 = vdwg.mxu0
    %v249 = vmax.f32 %v210, 0.0
    %v250 = vmax.f32 %v212, 0.0
    %v251 = vmax.f32 %v215, 0.0
    %v252 = vmax.f32 %v217, 0.0
    %v253 = vmax.f32 %v220, 0.0
    %v254 = vmax.f32 %v222, 0.0
    %v255 = vmax.f32 %v225, 0.0
    %v256 = vmax.f32 %v227, 0.0
    %v257 = vmax.f32 %v230, 0.0
    %v258 = vmax.f32 %v232, 0.0
    %v259 = vmax.f32 %v235, 0.0
    %v260 = vmax.f32 %v237, 0.0
    %v261 = vmax.f32 %v240, 0.0
    %v262 = vmax.f32 %v242, 0.0
    %v263 = vmax.f32 %v245, 0.0
    %v264 = vmax.f32 %v247, 0.0
    %v265 = vpack.c.bf16 %v250, %v249
    %v266 = vpack.c.bf16 %v252, %v251
    %v267 = vpack.c.bf16 %v254, %v253
    %v268 = vpack.c.bf16 %v256, %v255
    %v269 = vpack.c.bf16 %v258, %v257
    %v270 = vpack.c.bf16 %v260, %v259
    %v271 = vpack.c.bf16 %v262, %v261
    %v272 = vpack.c.bf16 %v264, %v263
    %v273 = vld [vmem:[#allocation7] sm:$0xf]
    %v274 = vld [vmem:[#allocation7 + $0x4] sm:$0xf]
    %v275 = vld [vmem:[#allocation7 + $0x8] sm:$0xf]
    %v276 = vld [vmem:[#allocation7 + $0xc] sm:$0xf]
    %v277 = vld [vmem:[#allocation7 + $0x10] sm:$0xf]
    %v278 = vld [vmem:[#allocation7 + $0x14] sm:$0xf]
    %v279 = vld [vmem:[#allocation7 + $0x18] sm:$0xf]
    %v280 = vld [vmem:[#allocation7 + $0x1c] sm:$0xf]
    %v281 = vld [vmem:[#allocation7 + $0x20] sm:$0xf]
    %v282 = vld [vmem:[#allocation7 + $0x24] sm:$0xf]
    %v283 = vld [vmem:[#allocation7 + $0x28] sm:$0xf]
    %v284 = vld [vmem:[#allocation7 + $0x2c] sm:$0xf]
    %v285 = vld [vmem:[#allocation7 + $0x30] sm:$0xf]
    %v286 = vld [vmem:[#allocation7 + $0x34] sm:$0xf]
    %v287 = vld [vmem:[#allocation7 + $0x38] sm:$0xf]
    %v288 = vld [vmem:[#allocation7 + $0x3c] sm:$0xf]
    %v289 = vld [vmem:[%s4] sm:$0x1]
    %v291 = vperm.slane %v289, 0
    %v309 = vunpack.c.l.b16 %v273
    %v310 = vunpack.c.l.b16 %v274
    %v311 = vunpack.c.l.b16 %v275
    %v312 = vunpack.c.l.b16 %v276
    %v313 = vunpack.c.l.b16 %v277
    %v314 = vunpack.c.l.b16 %v278
    %v315 = vunpack.c.l.b16 %v279
    %v316 = vunpack.c.l.b16 %v280
    %v317 = vunpack.c.l.b16 %v281
    %v318 = vunpack.c.l.b16 %v282
    %v319 = vunpack.c.l.b16 %v283
    %v320 = vunpack.c.l.b16 %v284
    %v321 = vunpack.c.l.b16 %v285
    %v322 = vunpack.c.l.b16 %v286
    %v323 = vunpack.c.l.b16 %v287
    %v324 = vunpack.c.l.b16 %v288
    %v325 = vpack.c.b16 %v310, %v309
    %v326 = vpack.c.b16 %v312, %v311
    %v327 = vpack.c.b16 %v314, %v313
    %v328 = vpack.c.b16 %v316, %v315
    %v329 = vpack.c.b16 %v318, %v317
    %v330 = vpack.c.b16 %v320, %v319
    %v331 = vpack.c.b16 %v322, %v321
    %v332 = vpack.c.b16 %v324, %v323
    %341 = vmatpush.bf16.msra.mxu0 %v332
    %342 = vmatpush.bf16.msra.mxu0 %v331
    %343 = vmatpush.bf16.msra.mxu0 %v330
    %344 = vmatpush.bf16.msra.mxu0 %v329
    %345 = vmatpush.bf16.msra.mxu0 %v328
    %346 = vmatpush.bf16.msra.mxu0 %v327
    %347 = vmatpush.bf16.msra.mxu0 %v326
    %348 = vmatpush.bf16.msra.mxu0 %v325
    %349 = vmatmul.bf16.gmra.mxu0 %v265
    %v350 = vpop.f32.mrf.mxu0
    %v351 = vadd.f32 %v291, %v350
    %v352 = vpop.f32.mrf.mxu0
    %v353 = vadd.f32 %v291, %v352
    %354 = vmatmul.bf16.gmra.mxu0 %v266
    %v355 = vpop.f32.mrf.mxu0
    %v356 = vadd.f32 %v291, %v355
    %v357 = vpop.f32.mrf.mxu0
    %v358 = vadd.f32 %v291, %v357
    %359 = vmatmul.bf16.gmra.mxu0 %v267
    %v360 = vpop.f32.mrf.mxu0
    %v361 = vadd.f32 %v291, %v360
    %v362 = vpop.f32.mrf.mxu0
    %v363 = vadd.f32 %v291, %v362
    %364 = vmatmul.bf16.gmra.mxu0 %v268
    %v365 = vpop.f32.mrf.mxu0
    %v366 = vadd.f32 %v291, %v365
    %v367 = vpop.f32.mrf.mxu0
    %v368 = vadd.f32 %v291, %v367
    %369 = vmatmul.bf16.gmra.mxu0 %v269
    %v370 = vpop.f32.mrf.mxu0
    %v371 = vadd.f32 %v291, %v370
    %v372 = vpop.f32.mrf.mxu0
    %v373 = vadd.f32 %v291, %v372
    %374 = vmatmul.bf16.gmra.mxu0 %v270
    %v375 = vpop.f32.mrf.mxu0
    %v376 = vadd.f32 %v291, %v375
    %v377 = vpop.f32.mrf.mxu0
    %v378 = vadd.f32 %v291, %v377
    %379 = vmatmul.bf16.gmra.mxu0 %v271
    %v380 = vpop.f32.mrf.mxu0
    %v381 = vadd.f32 %v291, %v380
    %v382 = vpop.f32.mrf.mxu0
    %v383 = vadd.f32 %v291, %v382
    %384 = vmatmul.bf16.gmra.mxu0 %v272
    %v385 = vpop.f32.mrf.mxu0
    %v386 = vadd.f32 %v291, %v385
    %v387 = vpop.f32.mrf.mxu0
    %v388 = vadd.f32 %v291, %v387
    %389 = vdwg.mxu0
    %v390 = vxor.u32 %v351, 2147483648
    %v391 = vxor.u32 %v353, 2147483648
    %v392 = vxor.u32 %v356, 2147483648
    %v393 = vxor.u32 %v358, 2147483648
    %v394 = vxor.u32 %v361, 2147483648
    %v395 = vxor.u32 %v363, 2147483648
    %v396 = vxor.u32 %v366, 2147483648
    %v397 = vxor.u32 %v368, 2147483648
    %v398 = vxor.u32 %v371, 2147483648
    %v399 = vxor.u32 %v373, 2147483648
    %v400 = vxor.u32 %v376, 2147483648
    %v401 = vxor.u32 %v378, 2147483648
    %v402 = vxor.u32 %v381, 2147483648
    %v403 = vxor.u32 %v383, 2147483648
    %v404 = vxor.u32 %v386, 2147483648
    %v405 = vxor.u32 %v388, 2147483648
    %v406 = vmul.f32 %v390, 1.442695
    %v407 = vpow.pop %v406
    %v408 = vmul.f32 %v391, 1.442695
    %v409 = vpow.pop %v408
    %v410 = vmul.f32 %v392, 1.442695
    %v411 = vpow.pop %v410
    %v412 = vmul.f32 %v393, 1.442695
    %v413 = vpow.pop %v412
    %v414 = vmul.f32 %v394, 1.442695
    %v415 = vpow.pop %v414
    %v416 = vmul.f32 %v395, 1.442695
    %v417 = vpow.pop %v416
    %v418 = vmul.f32 %v396, 1.442695
    %v419 = vpow.pop %v418
    %v420 = vmul.f32 %v397, 1.442695
    %v421 = vpow.pop %v420
    %v422 = vmul.f32 %v398, 1.442695
    %v423 = vpow.pop %v422
    %v424 = vmul.f32 %v399, 1.442695
    %v425 = vpow.pop %v424
    %v426 = vmul.f32 %v400, 1.442695
    %v427 = vpow.pop %v426
    %v428 = vmul.f32 %v401, 1.442695
    %v429 = vpow.pop %v428
    %v430 = vmul.f32 %v402, 1.442695
    %v431 = vpow.pop %v430
    %v432 = vmul.f32 %v403, 1.442695
    %v433 = vpow.pop %v432
    %v434 = vmul.f32 %v404, 1.442695
    %v435 = vpow.pop %v434
    %v436 = vmul.f32 %v405, 1.442695
    %v437 = vpow.pop %v436
    %v438 = vadd.f32 %v407, 1.0
    %v439 = vadd.f32 %v409, 1.0
    %v440 = vadd.f32 %v411, 1.0
    %v441 = vadd.f32 %v413, 1.0
    %v442 = vadd.f32 %v415, 1.0
    %v443 = vadd.f32 %v417, 1.0
    %v444 = vadd.f32 %v419, 1.0
    %v445 = vadd.f32 %v421, 1.0
    %v446 = vadd.f32 %v423, 1.0
    %v447 = vadd.f32 %v425, 1.0
    %v448 = vadd.f32 %v427, 1.0
    %v449 = vadd.f32 %v429, 1.0
    %v450 = vadd.f32 %v431, 1.0
    %v451 = vadd.f32 %v433, 1.0
    %v452 = vadd.f32 %v435, 1.0
    %v453 = vadd.f32 %v437, 1.0
    %v454 = vrcp.pop %v438
    %v455 = vmul.f32 %v438, %v454
    %v456 = vsub.f32 1.0, %v455
    %v457 = vmul.f32 %v454, %v456
    %v458 = vadd.f32 %v454, %v457
    %vm459 = vweird.f32 %v438
    %vm460 = vweird.f32 %v454
    %vm461 = vmor %vm459, %vm460
    %v462 = vsel %vm461, %v454, %v458
    %v463 = vand.u32 2147483647, %v438
    %vm464 = vcmp.eq.f32.partialorder %v463, 8.507059e+37
    %v465 = vand.u32 %v438, 2147483648
    %v466 = vor.u32 1.1754944e-38, %v465
    %v467 = vsel %vm464, %v466, %v462
    %v468 = vmul.f32 1.0, %v467
    %v469 = vrcp.pop %v439
    %v470 = vmul.f32 %v439, %v469
    %v471 = vsub.f32 1.0, %v470
    %v472 = vmul.f32 %v469, %v471
    %v473 = vadd.f32 %v469, %v472
    %vm474 = vweird.f32 %v439
    %vm475 = vweird.f32 %v469
    %vm476 = vmor %vm474, %vm475
    %v477 = vsel %vm476, %v469, %v473
    %v478 = vand.u32 2147483647, %v439
    %vm479 = vcmp.eq.f32.partialorder %v478, 8.507059e+37
    %v480 = vand.u32 %v439, 2147483648
    %v481 = vor.u32 1.1754944e-38, %v480
    %v482 = vsel %vm479, %v481, %v477
    %v483 = vmul.f32 1.0, %v482
    %v484 = vrcp.pop %v440
    %v485 = vmul.f32 %v440, %v484
    %v486 = vsub.f32 1.0, %v485
    %v487 = vmul.f32 %v484, %v486
    %v488 = vadd.f32 %v484, %v487
    %vm489 = vweird.f32 %v440
    %vm490 = vweird.f32 %v484
    %vm491 = vmor %vm489, %vm490
    %v492 = vsel %vm491, %v484, %v488
    %v493 = vand.u32 2147483647, %v440
    %vm494 = vcmp.eq.f32.partialorder %v493, 8.507059e+37
    %v495 = vand.u32 %v440, 2147483648
    %v496 = vor.u32 1.1754944e-38, %v495
    %v497 = vsel %vm494, %v496, %v492
    %v498 = vmul.f32 1.0, %v497
    %v499 = vrcp.pop %v441
    %v500 = vmul.f32 %v441, %v499
    %v501 = vsub.f32 1.0, %v500
    %v502 = vmul.f32 %v499, %v501
    %v503 = vadd.f32 %v499, %v502
    %vm504 = vweird.f32 %v441
    %vm505 = vweird.f32 %v499
    %vm506 = vmor %vm504, %vm505
    %v507 = vsel %vm506, %v499, %v503
    %v508 = vand.u32 2147483647, %v441
    %vm509 = vcmp.eq.f32.partialorder %v508, 8.507059e+37
    %v510 = vand.u32 %v441, 2147483648
    %v511 = vor.u32 1.1754944e-38, %v510
    %v512 = vsel %vm509, %v511, %v507
    %v513 = vmul.f32 1.0, %v512
    %v514 = vrcp.pop %v442
    %v515 = vmul.f32 %v442, %v514
    %v516 = vsub.f32 1.0, %v515
    %v517 = vmul.f32 %v514, %v516
    %v518 = vadd.f32 %v514, %v517
    %vm519 = vweird.f32 %v442
    %vm520 = vweird.f32 %v514
    %vm521 = vmor %vm519, %vm520
    %v522 = vsel %vm521, %v514, %v518
    %v523 = vand.u32 2147483647, %v442
    %vm524 = vcmp.eq.f32.partialorder %v523, 8.507059e+37
    %v525 = vand.u32 %v442, 2147483648
    %v526 = vor.u32 1.1754944e-38, %v525
    %v527 = vsel %vm524, %v526, %v522
    %v528 = vmul.f32 1.0, %v527
    %v529 = vrcp.pop %v443
    %v530 = vmul.f32 %v443, %v529
    %v531 = vsub.f32 1.0, %v530
    %v532 = vmul.f32 %v529, %v531
    %v533 = vadd.f32 %v529, %v532
    %vm534 = vweird.f32 %v443
    %vm535 = vweird.f32 %v529
    %vm536 = vmor %vm534, %vm535
    %v537 = vsel %vm536, %v529, %v533
    %v538 = vand.u32 2147483647, %v443
    %vm539 = vcmp.eq.f32.partialorder %v538, 8.507059e+37
    %v540 = vand.u32 %v443, 2147483648
    %v541 = vor.u32 1.1754944e-38, %v540
    %v542 = vsel %vm539, %v541, %v537
    %v543 = vmul.f32 1.0, %v542
    %v544 = vrcp.pop %v444
    %v545 = vmul.f32 %v444, %v544
    %v546 = vsub.f32 1.0, %v545
    %v547 = vmul.f32 %v544, %v546
    %v548 = vadd.f32 %v544, %v547
    %vm549 = vweird.f32 %v444
    %vm550 = vweird.f32 %v544
    %vm551 = vmor %vm549, %vm550
    %v552 = vsel %vm551, %v544, %v548
    %v553 = vand.u32 2147483647, %v444
    %vm554 = vcmp.eq.f32.partialorder %v553, 8.507059e+37
    %v555 = vand.u32 %v444, 2147483648
    %v556 = vor.u32 1.1754944e-38, %v555
    %v557 = vsel %vm554, %v556, %v552
    %v558 = vmul.f32 1.0, %v557
    %v559 = vrcp.pop %v445
    %v560 = vmul.f32 %v445, %v559
    %v561 = vsub.f32 1.0, %v560
    %v562 = vmul.f32 %v559, %v561
    %v563 = vadd.f32 %v559, %v562
    %vm564 = vweird.f32 %v445
    %vm565 = vweird.f32 %v559
    %vm566 = vmor %vm564, %vm565
    %v567 = vsel %vm566, %v559, %v563
    %v568 = vand.u32 2147483647, %v445
    %vm569 = vcmp.eq.f32.partialorder %v568, 8.507059e+37
    %v570 = vand.u32 %v445, 2147483648
    %v571 = vor.u32 1.1754944e-38, %v570
    %v572 = vsel %vm569, %v571, %v567
    %v573 = vmul.f32 1.0, %v572
    %v574 = vrcp.pop %v446
    %v575 = vmul.f32 %v446, %v574
    %v576 = vsub.f32 1.0, %v575
    %v577 = vmul.f32 %v574, %v576
    %v578 = vadd.f32 %v574, %v577
    %vm579 = vweird.f32 %v446
    %vm580 = vweird.f32 %v574
    %vm581 = vmor %vm579, %vm580
    %v582 = vsel %vm581, %v574, %v578
    %v583 = vand.u32 2147483647, %v446
    %vm584 = vcmp.eq.f32.partialorder %v583, 8.507059e+37
    %v585 = vand.u32 %v446, 2147483648
    %v586 = vor.u32 1.1754944e-38, %v585
    %v587 = vsel %vm584, %v586, %v582
    %v588 = vmul.f32 1.0, %v587
    %v589 = vrcp.pop %v447
    %v590 = vmul.f32 %v447, %v589
    %v591 = vsub.f32 1.0, %v590
    %v592 = vmul.f32 %v589, %v591
    %v593 = vadd.f32 %v589, %v592
    %vm594 = vweird.f32 %v447
    %vm595 = vweird.f32 %v589
    %vm596 = vmor %vm594, %vm595
    %v597 = vsel %vm596, %v589, %v593
    %v598 = vand.u32 2147483647, %v447
    %vm599 = vcmp.eq.f32.partialorder %v598, 8.507059e+37
    %v600 = vand.u32 %v447, 2147483648
    %v601 = vor.u32 1.1754944e-38, %v600
    %v602 = vsel %vm599, %v601, %v597
    %v603 = vmul.f32 1.0, %v602
    %v604 = vrcp.pop %v448
    %v605 = vmul.f32 %v448, %v604
    %v606 = vsub.f32 1.0, %v605
    %v607 = vmul.f32 %v604, %v606
    %v608 = vadd.f32 %v604, %v607
    %vm609 = vweird.f32 %v448
    %vm610 = vweird.f32 %v604
    %vm611 = vmor %vm609, %vm610
    %v612 = vsel %vm611, %v604, %v608
    %v613 = vand.u32 2147483647, %v448
    %vm614 = vcmp.eq.f32.partialorder %v613, 8.507059e+37
    %v615 = vand.u32 %v448, 2147483648
    %v616 = vor.u32 1.1754944e-38, %v615
    %v617 = vsel %vm614, %v616, %v612
    %v618 = vmul.f32 1.0, %v617
    %v619 = vrcp.pop %v449
    %v620 = vmul.f32 %v449, %v619
    %v621 = vsub.f32 1.0, %v620
    %v622 = vmul.f32 %v619, %v621
    %v623 = vadd.f32 %v619, %v622
    %vm624 = vweird.f32 %v449
    %vm625 = vweird.f32 %v619
    %vm626 = vmor %vm624, %vm625
    %v627 = vsel %vm626, %v619, %v623
    %v628 = vand.u32 2147483647, %v449
    %vm629 = vcmp.eq.f32.partialorder %v628, 8.507059e+37
    %v630 = vand.u32 %v449, 2147483648
    %v631 = vor.u32 1.1754944e-38, %v630
    %v632 = vsel %vm629, %v631, %v627
    %v633 = vmul.f32 1.0, %v632
    %v634 = vrcp.pop %v450
    %v635 = vmul.f32 %v450, %v634
    %v636 = vsub.f32 1.0, %v635
    %v637 = vmul.f32 %v634, %v636
    %v638 = vadd.f32 %v634, %v637
    %vm639 = vweird.f32 %v450
    %vm640 = vweird.f32 %v634
    %vm641 = vmor %vm639, %vm640
    %v642 = vsel %vm641, %v634, %v638
    %v643 = vand.u32 2147483647, %v450
    %vm644 = vcmp.eq.f32.partialorder %v643, 8.507059e+37
    %v645 = vand.u32 %v450, 2147483648
    %v646 = vor.u32 1.1754944e-38, %v645
    %v647 = vsel %vm644, %v646, %v642
    %v648 = vmul.f32 1.0, %v647
    %v649 = vrcp.pop %v451
    %v650 = vmul.f32 %v451, %v649
    %v651 = vsub.f32 1.0, %v650
    %v652 = vmul.f32 %v649, %v651
    %v653 = vadd.f32 %v649, %v652
    %vm654 = vweird.f32 %v451
    %vm655 = vweird.f32 %v649
    %vm656 = vmor %vm654, %vm655
    %v657 = vsel %vm656, %v649, %v653
    %v658 = vand.u32 2147483647, %v451
    %vm659 = vcmp.eq.f32.partialorder %v658, 8.507059e+37
    %v660 = vand.u32 %v451, 2147483648
    %v661 = vor.u32 1.1754944e-38, %v660
    %v662 = vsel %vm659, %v661, %v657
    %v663 = vmul.f32 1.0, %v662
    %v664 = vrcp.pop %v452
    %v665 = vmul.f32 %v452, %v664
    %v666 = vsub.f32 1.0, %v665
    %v667 = vmul.f32 %v664, %v666
    %v668 = vadd.f32 %v664, %v667
    %vm669 = vweird.f32 %v452
    %vm670 = vweird.f32 %v664
    %vm671 = vmor %vm669, %vm670
    %v672 = vsel %vm671, %v664, %v668
    %v673 = vand.u32 2147483647, %v452
    %vm674 = vcmp.eq.f32.partialorder %v673, 8.507059e+37
    %v675 = vand.u32 %v452, 2147483648
    %v676 = vor.u32 1.1754944e-38, %v675
    %v677 = vsel %vm674, %v676, %v672
    %v678 = vmul.f32 1.0, %v677
    %v679 = vrcp.pop %v453
    %v680 = vmul.f32 %v453, %v679
    %v681 = vsub.f32 1.0, %v680
    %v682 = vmul.f32 %v679, %v681
    %v683 = vadd.f32 %v679, %v682
    %vm684 = vweird.f32 %v453
    %vm685 = vweird.f32 %v679
    %vm686 = vmor %vm684, %vm685
    %v687 = vsel %vm686, %v679, %v683
    %v688 = vand.u32 2147483647, %v453
    %vm689 = vcmp.eq.f32.partialorder %v688, 8.507059e+37
    %v690 = vand.u32 %v453, 2147483648
    %v691 = vor.u32 1.1754944e-38, %v690
    %v692 = vsel %vm689, %v691, %v687
    %v693 = vmul.f32 1.0, %v692
    %694 = vst [vmem:[#allocation8] sm:$0xff] %v468
    %695 = vst [vmem:[#allocation8 + $0x8] sm:$0xff] %v483
    %696 = vst [vmem:[#allocation8 + $0x10] sm:$0xff] %v498
    %697 = vst [vmem:[#allocation8 + $0x18] sm:$0xff] %v513
    %698 = vst [vmem:[#allocation8 + $0x20] sm:$0xff] %v528
    %699 = vst [vmem:[#allocation8 + $0x28] sm:$0xff] %v543
    %700 = vst [vmem:[#allocation8 + $0x30] sm:$0xff] %v558
    %701 = vst [vmem:[#allocation8 + $0x38] sm:$0xff] %v573
    %702 = vst [vmem:[#allocation8 + $0x40] sm:$0xff] %v588
    %703 = vst [vmem:[#allocation8 + $0x48] sm:$0xff] %v603
    %704 = vst [vmem:[#allocation8 + $0x50] sm:$0xff] %v618
    %705 = vst [vmem:[#allocation8 + $0x58] sm:$0xff] %v633
    %706 = vst [vmem:[#allocation8 + $0x60] sm:$0xff] %v648
    %707 = vst [vmem:[#allocation8 + $0x68] sm:$0xff] %v663
    %708 = vst [vmem:[#allocation8 + $0x70] sm:$0xff] %v678
    %709 = vst [vmem:[#allocation8 + $0x78] sm:$0xff] %v693
    // Predicated region
    $region34: #{tpu_custom_call.1} parent=1 // pred_check
      _
    $region35: #{tpu_custom_call.1} parent=1 // pred_check_branch
      %711 = sbr.rel (0) target = $region37
    $region36: #{tpu_custom_call.1} parent=1 // pred_region
      %713 = vsyncadd [#allocation4], 0
      %s714 = sshll.u32 [#allocation8], 4
      %s715 = int_to_ptr.vmem [resolvable:$true] %s714
      %s716 = sshll.u32 %s5, 4
      %s717 = int_to_ptr.hbm [resolvable:$true] %s716
      %722 = dma.vmem_to_hbm [thread:$0]  %s715, 2048, %s717, [#allocation4], 128, 128, 8
    $region37: #{tpu_custom_call.1} parent=1 // pred_fallthru
      _
    // Predicated region
    $region38: #{tpu_custom_call.1} parent=1 // pred_check
      _
    $region39: #{tpu_custom_call.1} parent=1 // pred_check_branch
      %724 = sbr.rel (0) target = $region41
    $region40: #{tpu_custom_call.1} parent=1 // pred_region
      %726 = dma.done [#allocation4], 2048
    $region41: #{tpu_custom_call.1} parent=1 // pred_fallthru
      _
    %727 = vsyncpa [#allocation3], 1
    %728 = vsyncpa [#allocation6], 1
    %729 = vsyncpa [#allocation4], 1

// kernel: tpu_custom_call.1
$region0: #{tpu_custom_call.1}
  #allocation0 [shape = 'u32[]', space=smem, size = 0x4, offset = 0x4, fixed_abs, tag = 'smem constant byte address 0x4 - core index']
  #allocation1 [shape = 'u32[72,128]{1,0:T(1,128)}', space=vmem, size = 0x9000, scoped, tag = 'internal scratch']
  %s0 = inlined_call_operand.hbm [shape: bf16[128,128], index: 0, kind: input, shape index: {}]
  %s1 = inlined_call_operand.hbm [shape: bf16[128,128], index: 1, kind: input, shape index: {}]
  %s2 = inlined_call_operand.vmem [shape: f32[1,128], index: 2, kind: input, shape index: {}]
  %s3 = inlined_call_operand.hbm [shape: bf16[128,128], index: 3, kind: input, shape index: {}]
  %s4 = inlined_call_operand.vmem [shape: f32[1,128], index: 4, kind: input, shape index: {}]
  %s5 = inlined_call_operand.hbm [shape: f32[128,128], index: 5, kind: output, shape index: {}]
  %s6 = sld [smem:[#allocation0]]
  $region42: #{tpu_custom_call.1} parent=0
    _
  %s8 = ssub.s32 1, %s6
  %s9 = scalar_select 0, %s8, %s6
  $region1: #{tpu_custom_call.1} parent=0
    #allocation2 [shape = 'u8[32768]{0}', space=vmem, size = 0x8000, scoped, tag = 'input window, operand 0, single buffered']
    #allocation3 [shape = 's32[1]{0}', space=sflag, size = 0x4, scoped, tag = 'scoped memory for tpu_custom_call.1']
    #allocation4 [shape = 's32[1]{0}', space=sflag, size = 0x4, scoped, tag = 'scoped memory for tpu_custom_call.1']
    #allocation5 [shape = 'u8[32768]{0}', space=vmem, size = 0x8000, scoped, tag = 'input window, operand 1, single buffered']
    #allocation6 [shape = 's32[1]{0}', space=sflag, size = 0x4, scoped, tag = 'scoped memory for tpu_custom_call.1']
    #allocation7 [shape = 'u8[32768]{0}', space=vmem, size = 0x8000, scoped, tag = 'input window, operand 3, single buffered']
    #allocation8 [shape = 'u8[65536]{0}', space=vmem, size = 0x10000, scoped, tag = 'output window, operand 0, single buffered']
    %10 = vsyncpa [#allocation3], 0
    %11 = vsyncpa [#allocation6], 0
    %12 = vsyncpa [#allocation4], 0
    // Predicated region
    $region2: #{tpu_custom_call.1} parent=1 // pred_check
      _
    $region3: #{tpu_custom_call.1} parent=1 // pred_check_branch
      %14 = sbr.rel (0) target = $region5
    $region4: #{tpu_custom_call.1} parent=1 // pred_region
      %16 = vsyncadd [#allocation3], 0
      %s17 = sshll.u32 %s0, 4
      %s18 = int_to_ptr.hbm [resolvable:$true] %s17
      %s19 = sshll.u32 [#allocation2], 4
      %s20 = int_to_ptr.vmem [resolvable:$true] %s19
      %25 = dma.hbm_to_vmem [thread:$0]  %s18, 1024, %s20, [#allocation3], 64, 64, 4
    $region5: #{tpu_custom_call.1} parent=1 // pred_fallthru
      _
    // Predicated region
    $region6: #{tpu_custom_call.1} parent=1 // pred_check
      _
    $region7: #{tpu_custom_call.1} parent=1 // pred_check_branch
      %27 = sbr.rel (0) target = $region9
    $region8: #{tpu_custom_call.1} parent=1 // pred_region
      %29 = vsyncadd [#allocation6], 0
      %s30 = sshll.u32 %s1, 4
      %s31 = int_to_ptr.hbm [resolvable:$true] %s30
      %s32 = sshll.u32 [#allocation5], 4
      %s33 = int_to_ptr.vmem [resolvable:$true] %s32
      %38 = dma.hbm_to_vmem [thread:$0]  %s31, 1024, %s33, [#allocation6], 64, 64, 4
    $region9: #{tpu_custom_call.1} parent=1 // pred_fallthru
      _
    // Predicated region
    $region10: #{tpu_custom_call.1} parent=1 // pred_check
      _
    $region11: #{tpu_custom_call.1} parent=1 // pred_check_branch
      %40 = sbr.rel (0) target = $region13
    $region12: #{tpu_custom_call.1} parent=1 // pred_region
      _
    $region13: #{tpu_custom_call.1} parent=1 // pred_fallthru
      _
    // Predicated region
    $region14: #{tpu_custom_call.1} parent=1 // pred_check
      _
    $region15: #{tpu_custom_call.1} parent=1 // pred_check_branch
      %42 = sbr.rel (0) target = $region17
    $region16: #{tpu_custom_call.1} parent=1 // pred_region
      %44 = vsyncadd [#allocation6], 0
      %s45 = sshll.u32 %s3, 4
      %s46 = int_to_ptr.hbm [resolvable:$true] %s45
      %s47 = sshll.u32 [#allocation7], 4
      %s48 = int_to_ptr.vmem [resolvable:$true] %s47
      %53 = dma.hbm_to_vmem [thread:$0]  %s46, 1024, %s48, [#allocation6], 64, 64, 4
    $region17: #{tpu_custom_call.1} parent=1 // pred_fallthru
      _
    // Predicated region
    $region18: #{tpu_custom_call.1} parent=1 // pred_check
      _
    $region19: #{tpu_custom_call.1} parent=1 // pred_check_branch
      %55 = sbr.rel (0) target = $region21
    $region20: #{tpu_custom_call.1} parent=1 // pred_region
      _
    $region21: #{tpu_custom_call.1} parent=1 // pred_fallthru
      _
    // Predicated region
    $region22: #{tpu_custom_call.1} parent=1 // pred_check
      _
    $region23: #{tpu_custom_call.1} parent=1 // pred_check_branch
      %57 = sbr.rel (0) target = $region25
    $region24: #{tpu_custom_call.1} parent=1 // pred_region
      %59 = dma.done [#allocation3], 1024
    $region25: #{tpu_custom_call.1} parent=1 // pred_fallthru
      _
    // Predicated region
    $region26: #{tpu_custom_call.1} parent=1 // pred_check
      _
    $region27: #{tpu_custom_call.1} parent=1 // pred_check_branch
      %61 = sbr.rel (0) target = $region29
    $region28: #{tpu_custom_call.1} parent=1 // pred_region
      %63 = dma.done [#allocation6], 1024
    $region29: #{tpu_custom_call.1} parent=1 // pred_fallthru
      _
    // Predicated region
    $region30: #{tpu_custom_call.1} parent=1 // pred_check
      _
    $region31: #{tpu_custom_call.1} parent=1 // pred_check_branch
      %65 = sbr.rel (0) target = $region33
    $region32: #{tpu_custom_call.1} parent=1 // pred_region
      %67 = dma.done [#allocation6], 1024
    $region33: #{tpu_custom_call.1} parent=1 // pred_fallthru
      _
    %v68 = vld [vmem:[#allocation2] sm:$0xf]
    %v69 = vld [vmem:[#allocation2 + $0x4] sm:$0xf]
    %v70 = vld [vmem:[#allocation2 + $0x8] sm:$0xf]
    %v71 = vld [vmem:[#allocation2 + $0xc] sm:$0xf]
    %v72 = vld [vmem:[#allocation2 + $0x10] sm:$0xf]
    %v73 = vld [vmem:[#allocation2 + $0x14] sm:$0xf]
    %v74 = vld [vmem:[#allocation2 + $0x18] sm:$0xf]
    %v75 = vld [vmem:[#allocation2 + $0x1c] sm:$0xf]
    %v76 = vld [vmem:[#allocation2 + $0x20] sm:$0xf]
    %v77 = vld [vmem:[#allocation2 + $0x24] sm:$0xf]
    %v78 = vld [vmem:[#allocation2 + $0x28] sm:$0xf]
    %v79 = vld [vmem:[#allocation2 + $0x2c] sm:$0xf]
    %v80 = vld [vmem:[#allocation2 + $0x30] sm:$0xf]
    %v81 = vld [vmem:[#allocation2 + $0x34] sm:$0xf]
    %v82 = vld [vmem:[#allocation2 + $0x38] sm:$0xf]
    %v83 = vld [vmem:[#allocation2 + $0x3c] sm:$0xf]
    %v84 = vld [vmem:[#allocation5] sm:$0xf]
    %v85 = vld [vmem:[#allocation5 + $0x4] sm:$0xf]
    %v86 = vld [vmem:[#allocation5 + $0x8] sm:$0xf]
    %v87 = vld [vmem:[#allocation5 + $0xc] sm:$0xf]
    %v88 = vld [vmem:[#allocation5 + $0x10] sm:$0xf]
    %v89 = vld [vmem:[#allocation5 + $0x14] sm:$0xf]
    %v90 = vld [vmem:[#allocation5 + $0x18] sm:$0xf]
    %v91 = vld [vmem:[#allocation5 + $0x1c] sm:$0xf]
    %v92 = vld [vmem:[#allocation5 + $0x20] sm:$0xf]
    %v93 = vld [vmem:[#allocation5 + $0x24] sm:$0xf]
    %v94 = vld [vmem:[#allocation5 + $0x28] sm:$0xf]
    %v95 = vld [vmem:[#allocation5 + $0x2c] sm:$0xf]
    %v96 = vld [vmem:[#allocation5 + $0x30] sm:$0xf]
    %v97 = vld [vmem:[#allocation5 + $0x34] sm:$0xf]
    %v98 = vld [vmem:[#allocation5 + $0x38] sm:$0xf]
    %v99 = vld [vmem:[#allocation5 + $0x3c] sm:$0xf]
    %v100 = vld [vmem:[%s2] sm:$0x1]
    %v102 = vperm.slane %v100, 0
    %v120 = vunpack.c.l.b16 %v68
    %v121 = vunpack.c.l.b16 %v69
    %v122 = vunpack.c.l.b16 %v70
    %v123 = vunpack.c.l.b16 %v71
    %v124 = vunpack.c.l.b16 %v72
    %v125 = vunpack.c.l.b16 %v73
    %v126 = vunpack.c.l.b16 %v74
    %v127 = vunpack.c.l.b16 %v75
    %v128 = vunpack.c.l.b16 %v76
    %v129 = vunpack.c.l.b16 %v77
    %v130 = vunpack.c.l.b16 %v78
    %v131 = vunpack.c.l.b16 %v79
    %v132 = vunpack.c.l.b16 %v80
    %v133 = vunpack.c.l.b16 %v81
    %v134 = vunpack.c.l.b16 %v82
    %v135 = vunpack.c.l.b16 %v83
    %v136 = vpack.c.b16 %v121, %v120
    %v137 = vpack.c.b16 %v123, %v122
    %v138 = vpack.c.b16 %v125, %v124
    %v139 = vpack.c.b16 %v127, %v126
    %v140 = vpack.c.b16 %v129, %v128
    %v141 = vpack.c.b16 %v131, %v130
    %v142 = vpack.c.b16 %v133, %v132
    %v143 = vpack.c.b16 %v135, %v134
    %v168 = vunpack.c.l.b16 %v84
    %v169 = vunpack.c.l.b16 %v85
    %v170 = vunpack.c.l.b16 %v86
    %v171 = vunpack.c.l.b16 %v87
    %v172 = vunpack.c.l.b16 %v88
    %v173 = vunpack.c.l.b16 %v89
    %v174 = vunpack.c.l.b16 %v90
    %v175 = vunpack.c.l.b16 %v91
    %v176 = vunpack.c.l.b16 %v92
    %v177 = vunpack.c.l.b16 %v93
    %v178 = vunpack.c.l.b16 %v94
    %v179 = vunpack.c.l.b16 %v95
    %v180 = vunpack.c.l.b16 %v96
    %v181 = vunpack.c.l.b16 %v97
    %v182 = vunpack.c.l.b16 %v98
    %v183 = vunpack.c.l.b16 %v99
    %v184 = vpack.c.b16 %v169, %v168
    %v185 = vpack.c.b16 %v171, %v170
    %v186 = vpack.c.b16 %v173, %v172
    %v187 = vpack.c.b16 %v175, %v174
    %v188 = vpack.c.b16 %v177, %v176
    %v189 = vpack.c.b16 %v179, %v178
    %v190 = vpack.c.b16 %v181, %v180
    %v191 = vpack.c.b16 %v183, %v182
    %200 = vmatpush.bf16.msra.mxu0 %v191
    %201 = vmatpush.bf16.msra.mxu0 %v190
    %202 = vmatpush.bf16.msra.mxu0 %v189
    %203 = vmatpush.bf16.msra.mxu0 %v188
    %204 = vmatpush.bf16.msra.mxu0 %v187
    %205 = vmatpush.bf16.msra.mxu0 %v186
    %206 = vmatpush.bf16.msra.mxu0 %v185
    %207 = vmatpush.bf16.msra.mxu0 %v184
    %208 = vmatmul.bf16.gmra.mxu0 %v136
    %v209 = vpop.f32.mrf.mxu0
    %v210 = vadd.f32 %v102, %v209
    %v211 = vpop.f32.mrf.mxu0
    %v212 = vadd.f32 %v102, %v211
    %213 = vmatmul.bf16.gmra.mxu0 %v137
    %v214 = vpop.f32.mrf.mxu0
    %v215 = vadd.f32 %v102, %v214
    %v216 = vpop.f32.mrf.mxu0
    %v217 = vadd.f32 %v102, %v216
    %218 = vmatmul.bf16.gmra.mxu0 %v138
    %v219 = vpop.f32.mrf.mxu0
    %v220 = vadd.f32 %v102, %v219
    %v221 = vpop.f32.mrf.mxu0
    %v222 = vadd.f32 %v102, %v221
    %223 = vmatmul.bf16.gmra.mxu0 %v139
    %v224 = vpop.f32.mrf.mxu0
    %v225 = vadd.f32 %v102, %v224
    %v226 = vpop.f32.mrf.mxu0
    %v227 = vadd.f32 %v102, %v226
    %228 = vmatmul.bf16.gmra.mxu0 %v140
    %v229 = vpop.f32.mrf.mxu0
    %v230 = vadd.f32 %v102, %v229
    %v231 = vpop.f32.mrf.mxu0
    %v232 = vadd.f32 %v102, %v231
    %233 = vmatmul.bf16.gmra.mxu0 %v141
    %v234 = vpop.f32.mrf.mxu0
    %v235 = vadd.f32 %v102, %v234
    %v236 = vpop.f32.mrf.mxu0
    %v237 = vadd.f32 %v102, %v236
    %238 = vmatmul.bf16.gmra.mxu0 %v142
    %v239 = vpop.f32.mrf.mxu0
    %v240 = vadd.f32 %v102, %v239
    %v241 = vpop.f32.mrf.mxu0
    %v242 = vadd.f32 %v102, %v241
    %243 = vmatmul.bf16.gmra.mxu0 %v143
    %v244 = vpop.f32.mrf.mxu0
    %v245 = vadd.f32 %v102, %v244
    %v246 = vpop.f32.mrf.mxu0
    %v247 = vadd.f32 %v102, %v246
    %248 = vdwg.mxu0
    %v249 = vmax.f32 %v210, 0.0
    %v250 = vmax.f32 %v212, 0.0
    %v251 = vmax.f32 %v215, 0.0
    %v252 = vmax.f32 %v217, 0.0
    %v253 = vmax.f32 %v220, 0.0
    %v254 = vmax.f32 %v222, 0.0
    %v255 = vmax.f32 %v225, 0.0
    %v256 = vmax.f32 %v227, 0.0
    %v257 = vmax.f32 %v230, 0.0
    %v258 = vmax.f32 %v232, 0.0
    %v259 = vmax.f32 %v235, 0.0
    %v260 = vmax.f32 %v237, 0.0
    %v261 = vmax.f32 %v240, 0.0
    %v262 = vmax.f32 %v242, 0.0
    %v263 = vmax.f32 %v245, 0.0
    %v264 = vmax.f32 %v247, 0.0
    %v265 = vpack.c.bf16 %v250, %v249
    %v266 = vpack.c.bf16 %v252, %v251
    %v267 = vpack.c.bf16 %v254, %v253
    %v268 = vpack.c.bf16 %v256, %v255
    %v269 = vpack.c.bf16 %v258, %v257
    %v270 = vpack.c.bf16 %v260, %v259
    %v271 = vpack.c.bf16 %v262, %v261
    %v272 = vpack.c.bf16 %v264, %v263
    %v273 = vld [vmem:[#allocation7] sm:$0xf]
    %v274 = vld [vmem:[#allocation7 + $0x4] sm:$0xf]
    %v275 = vld [vmem:[#allocation7 + $0x8] sm:$0xf]
    %v276 = vld [vmem:[#allocation7 + $0xc] sm:$0xf]
    %v277 = vld [vmem:[#allocation7 + $0x10] sm:$0xf]
    %v278 = vld [vmem:[#allocation7 + $0x14] sm:$0xf]
    %v279 = vld [vmem:[#allocation7 + $0x18] sm:$0xf]
    %v280 = vld [vmem:[#allocation7 + $0x1c] sm:$0xf]
    %v281 = vld [vmem:[#allocation7 + $0x20] sm:$0xf]
    %v282 = vld [vmem:[#allocation7 + $0x24] sm:$0xf]
    %v283 = vld [vmem:[#allocation7 + $0x28] sm:$0xf]
    %v284 = vld [vmem:[#allocation7 + $0x2c] sm:$0xf]
    %v285 = vld [vmem:[#allocation7 + $0x30] sm:$0xf]
    %v286 = vld [vmem:[#allocation7 + $0x34] sm:$0xf]
    %v287 = vld [vmem:[#allocation7 + $0x38] sm:$0xf]
    %v288 = vld [vmem:[#allocation7 + $0x3c] sm:$0xf]
    %v289 = vld [vmem:[%s4] sm:$0x1]
    %v291 = vperm.slane %v289, 0
    %v309 = vunpack.c.l.b16 %v273
    %v310 = vunpack.c.l.b16 %v274
    %v311 = vunpack.c.l.b16 %v275
    %v312 = vunpack.c.l.b16 %v276
    %v313 = vunpack.c.l.b16 %v277
    %v314 = vunpack.c.l.b16 %v278
    %v315 = vunpack.c.l.b16 %v279
    %v316 = vunpack.c.l.b16 %v280
    %v317 = vunpack.c.l.b16 %v281
    %v318 = vunpack.c.l.b16 %v282
    %v319 = vunpack.c.l.b16 %v283
    %v320 = vunpack.c.l.b16 %v284
    %v321 = vunpack.c.l.b16 %v285
    %v322 = vunpack.c.l.b16 %v286
    %v323 = vunpack.c.l.b16 %v287
    %v324 = vunpack.c.l.b16 %v288
    %v325 = vpack.c.b16 %v310, %v309
    %v326 = vpack.c.b16 %v312, %v311
    %v327 = vpack.c.b16 %v314, %v313
    %v328 = vpack.c.b16 %v316, %v315
    %v329 = vpack.c.b16 %v318, %v317
    %v330 = vpack.c.b16 %v320, %v319
    %v331 = vpack.c.b16 %v322, %v321
    %v332 = vpack.c.b16 %v324, %v323
    %341 = vmatpush.bf16.msra.mxu0 %v332
    %342 = vmatpush.bf16.msra.mxu0 %v331
    %343 = vmatpush.bf16.msra.mxu0 %v330
    %344 = vmatpush.bf16.msra.mxu0 %v329
    %345 = vmatpush.bf16.msra.mxu0 %v328
    %346 = vmatpush.bf16.msra.mxu0 %v327
    %347 = vmatpush.bf16.msra.mxu0 %v326
    %348 = vmatpush.bf16.msra.mxu0 %v325
    %349 = vmatmul.bf16.gmra.mxu0 %v265
    %v350 = vpop.f32.mrf.mxu0
    %v351 = vadd.f32 %v291, %v350
    %v352 = vpop.f32.mrf.mxu0
    %v353 = vadd.f32 %v291, %v352
    %354 = vmatmul.bf16.gmra.mxu0 %v266
    %v355 = vpop.f32.mrf.mxu0
    %v356 = vadd.f32 %v291, %v355
    %v357 = vpop.f32.mrf.mxu0
    %v358 = vadd.f32 %v291, %v357
    %359 = vmatmul.bf16.gmra.mxu0 %v267
    %v360 = vpop.f32.mrf.mxu0
    %v361 = vadd.f32 %v291, %v360
    %v362 = vpop.f32.mrf.mxu0
    %v363 = vadd.f32 %v291, %v362
    %364 = vmatmul.bf16.gmra.mxu0 %v268
    %v365 = vpop.f32.mrf.mxu0
    %v366 = vadd.f32 %v291, %v365
    %v367 = vpop.f32.mrf.mxu0
    %v368 = vadd.f32 %v291, %v367
    %369 = vmatmul.bf16.gmra.mxu0 %v269
    %v370 = vpop.f32.mrf.mxu0
    %v371 = vadd.f32 %v291, %v370
    %v372 = vpop.f32.mrf.mxu0
    %v373 = vadd.f32 %v291, %v372
    %374 = vmatmul.bf16.gmra.mxu0 %v270
    %v375 = vpop.f32.mrf.mxu0
    %v376 = vadd.f32 %v291, %v375
    %v377 = vpop.f32.mrf.mxu0
    %v378 = vadd.f32 %v291, %v377
    %379 = vmatmul.bf16.gmra.mxu0 %v271
    %v380 = vpop.f32.mrf.mxu0
    %v381 = vadd.f32 %v291, %v380
    %v382 = vpop.f32.mrf.mxu0
    %v383 = vadd.f32 %v291, %v382
    %384 = vmatmul.bf16.gmra.mxu0 %v272
    %v385 = vpop.f32.mrf.mxu0
    %v386 = vadd.f32 %v291, %v385
    %v387 = vpop.f32.mrf.mxu0
    %v388 = vadd.f32 %v291, %v387
    %389 = vdwg.mxu0
    %v390 = vxor.u32 %v351, 2147483648
    %v391 = vxor.u32 %v353, 2147483648
    %v392 = vxor.u32 %v356, 2147483648
    %v393 = vxor.u32 %v358, 2147483648
    %v394 = vxor.u32 %v361, 2147483648
    %v395 = vxor.u32 %v363, 2147483648
    %v396 = vxor.u32 %v366, 2147483648
    %v397 = vxor.u32 %v368, 2147483648
    %v398 = vxor.u32 %v371, 2147483648
    %v399 = vxor.u32 %v373, 2147483648
    %v400 = vxor.u32 %v376, 2147483648
    %v401 = vxor.u32 %v378, 2147483648
    %v402 = vxor.u32 %v381, 2147483648
    %v403 = vxor.u32 %v383, 2147483648
    %v404 = vxor.u32 %v386, 2147483648
    %v405 = vxor.u32 %v388, 2147483648
    %v406 = vmul.f32 %v390, 1.442695
    %v407 = vpow.pop %v406
    %v408 = vmul.f32 %v391, 1.442695
    %v409 = vpow.pop %v408
    %v410 = vmul.f32 %v392, 1.442695
    %v411 = vpow.pop %v410
    %v412 = vmul.f32 %v393, 1.442695
    %v413 = vpow.pop %v412
    %v414 = vmul.f32 %v394, 1.442695
    %v415 = vpow.pop %v414
    %v416 = vmul.f32 %v395, 1.442695
    %v417 = vpow.pop %v416
    %v418 = vmul.f32 %v396, 1.442695
    %v419 = vpow.pop %v418
    %v420 = vmul.f32 %v397, 1.442695
    %v421 = vpow.pop %v420
    %v422 = vmul.f32 %v398, 1.442695
    %v423 = vpow.pop %v422
    %v424 = vmul.f32 %v399, 1.442695
    %v425 = vpow.pop %v424
    %v426 = vmul.f32 %v400, 1.442695
    %v427 = vpow.pop %v426
    %v428 = vmul.f32 %v401, 1.442695
    %v429 = vpow.pop %v428
    %v430 = vmul.f32 %v402, 1.442695
    %v431 = vpow.pop %v430
    %v432 = vmul.f32 %v403, 1.442695
    %v433 = vpow.pop %v432
    %v434 = vmul.f32 %v404, 1.442695
    %v435 = vpow.pop %v434
    %v436 = vmul.f32 %v405, 1.442695
    %v437 = vpow.pop %v436
    %v438 = vadd.f32 %v407, 1.0
    %v439 = vadd.f32 %v409, 1.0
    %v440 = vadd.f32 %v411, 1.0
    %v441 = vadd.f32 %v413, 1.0
    %v442 = vadd.f32 %v415, 1.0
    %v443 = vadd.f32 %v417, 1.0
    %v444 = vadd.f32 %v419, 1.0
    %v445 = vadd.f32 %v421, 1.0
    %v446 = vadd.f32 %v423, 1.0
    %v447 = vadd.f32 %v425, 1.0
    %v448 = vadd.f32 %v427, 1.0
    %v449 = vadd.f32 %v429, 1.0
    %v450 = vadd.f32 %v431, 1.0
    %v451 = vadd.f32 %v433, 1.0
    %v452 = vadd.f32 %v435, 1.0
    %v453 = vadd.f32 %v437, 1.0
    %v454 = vrcp.pop %v438
    %v455 = vmul.f32 %v438, %v454
    %v456 = vsub.f32 1.0, %v455
    %v457 = vmul.f32 %v454, %v456
    %v458 = vadd.f32 %v454, %v457
    %vm459 = vweird.f32 %v438
    %vm460 = vweird.f32 %v454
    %vm461 = vmor %vm459, %vm460
    %v462 = vsel %vm461, %v454, %v458
    %v463 = vand.u32 2147483647, %v438
    %vm464 = vcmp.eq.f32.partialorder %v463, 8.507059e+37
    %v465 = vand.u32 %v438, 2147483648
    %v466 = vor.u32 1.1754944e-38, %v465
    %v467 = vsel %vm464, %v466, %v462
    %v468 = vmul.f32 1.0, %v467
    %v469 = vrcp.pop %v439
    %v470 = vmul.f32 %v439, %v469
    %v471 = vsub.f32 1.0, %v470
    %v472 = vmul.f32 %v469, %v471
    %v473 = vadd.f32 %v469, %v472
    %vm474 = vweird.f32 %v439
    %vm475 = vweird.f32 %v469
    %vm476 = vmor %vm474, %vm475
    %v477 = vsel %vm476, %v469, %v473
    %v478 = vand.u32 2147483647, %v439
    %vm479 = vcmp.eq.f32.partialorder %v478, 8.507059e+37
    %v480 = vand.u32 %v439, 2147483648
    %v481 = vor.u32 1.1754944e-38, %v480
    %v482 = vsel %vm479, %v481, %v477
    %v483 = vmul.f32 1.0, %v482
    %v484 = vrcp.pop %v440
    %v485 = vmul.f32 %v440, %v484
    %v486 = vsub.f32 1.0, %v485
    %v487 = vmul.f32 %v484, %v486
    %v488 = vadd.f32 %v484, %v487
    %vm489 = vweird.f32 %v440
    %vm490 = vweird.f32 %v484
    %vm491 = vmor %vm489, %vm490
    %v492 = vsel %vm491, %v484, %v488
    %v493 = vand.u32 2147483647, %v440
    %vm494 = vcmp.eq.f32.partialorder %v493, 8.507059e+37
    %v495 = vand.u32 %v440, 2147483648
    %v496 = vor.u32 1.1754944e-38, %v495
    %v497 = vsel %vm494, %v496, %v492
    %v498 = vmul.f32 1.0, %v497
    %v499 = vrcp.pop %v441
    %v500 = vmul.f32 %v441, %v499
    %v501 = vsub.f32 1.0, %v500
    %v502 = vmul.f32 %v499, %v501
    %v503 = vadd.f32 %v499, %v502
    %vm504 = vweird.f32 %v441
    %vm505 = vweird.f32 %v499
    %vm506 = vmor %vm504, %vm505
    %v507 = vsel %vm506, %v499, %v503
    %v508 = vand.u32 2147483647, %v441
    %vm509 = vcmp.eq.f32.partialorder %v508, 8.507059e+37
    %v510 = vand.u32 %v441, 2147483648
    %v511 = vor.u32 1.1754944e-38, %v510
    %v512 = vsel %vm509, %v511, %v507
    %v513 = vmul.f32 1.0, %v512
    %v514 = vrcp.pop %v442
    %v515 = vmul.f32 %v442, %v514
    %v516 = vsub.f32 1.0, %v515
    %v517 = vmul.f32 %v514, %v516
    %v518 = vadd.f32 %v514, %v517
    %vm519 = vweird.f32 %v442
    %vm520 = vweird.f32 %v514
    %vm521 = vmor %vm519, %vm520
    %v522 = vsel %vm521, %v514, %v518
    %v523 = vand.u32 2147483647, %v442
    %vm524 = vcmp.eq.f32.partialorder %v523, 8.507059e+37
    %v525 = vand.u32 %v442, 2147483648
    %v526 = vor.u32 1.1754944e-38, %v525
    %v527 = vsel %vm524, %v526, %v522
    %v528 = vmul.f32 1.0, %v527
    %v529 = vrcp.pop %v443
    %v530 = vmul.f32 %v443, %v529
    %v531 = vsub.f32 1.0, %v530
    %v532 = vmul.f32 %v529, %v531
    %v533 = vadd.f32 %v529, %v532
    %vm534 = vweird.f32 %v443
    %vm535 = vweird.f32 %v529
    %vm536 = vmor %vm534, %vm535
    %v537 = vsel %vm536, %v529, %v533
    %v538 = vand.u32 2147483647, %v443
    %vm539 = vcmp.eq.f32.partialorder %v538, 8.507059e+37
    %v540 = vand.u32 %v443, 2147483648
    %v541 = vor.u32 1.1754944e-38, %v540
    %v542 = vsel %vm539, %v541, %v537
    %v543 = vmul.f32 1.0, %v542
    %v544 = vrcp.pop %v444
    %v545 = vmul.f32 %v444, %v544
    %v546 = vsub.f32 1.0, %v545
    %v547 = vmul.f32 %v544, %v546
    %v548 = vadd.f32 %v544, %v547
    %vm549 = vweird.f32 %v444
    %vm550 = vweird.f32 %v544
    %vm551 = vmor %vm549, %vm550
    %v552 = vsel %vm551, %v544, %v548
    %v553 = vand.u32 2147483647, %v444
    %vm554 = vcmp.eq.f32.partialorder %v553, 8.507059e+37
    %v555 = vand.u32 %v444, 2147483648
    %v556 = vor.u32 1.1754944e-38, %v555
    %v557 = vsel %vm554, %v556, %v552
    %v558 = vmul.f32 1.0, %v557
    %v559 = vrcp.pop %v445
    %v560 = vmul.f32 %v445, %v559
    %v561 = vsub.f32 1.0, %v560
    %v562 = vmul.f32 %v559, %v561
    %v563 = vadd.f32 %v559, %v562
    %vm564 = vweird.f32 %v445
    %vm565 = vweird.f32 %v559
    %vm566 = vmor %vm564, %vm565
    %v567 = vsel %vm566, %v559, %v563
    %v568 = vand.u32 2147483647, %v445
    %vm569 = vcmp.eq.f32.partialorder %v568, 8.507059e+37
    %v570 = vand.u32 %v445, 2147483648
    %v571 = vor.u32 1.1754944e-38, %v570
    %v572 = vsel %vm569, %v571, %v567
    %v573 = vmul.f32 1.0, %v572
    %v574 = vrcp.pop %v446
    %v575 = vmul.f32 %v446, %v574
    %v576 = vsub.f32 1.0, %v575
    %v577 = vmul.f32 %v574, %v576
    %v578 = vadd.f32 %v574, %v577
    %vm579 = vweird.f32 %v446
    %vm580 = vweird.f32 %v574
    %vm581 = vmor %vm579, %vm580
    %v582 = vsel %vm581, %v574, %v578
    %v583 = vand.u32 2147483647, %v446
    %vm584 = vcmp.eq.f32.partialorder %v583, 8.507059e+37
    %v585 = vand.u32 %v446, 2147483648
    %v586 = vor.u32 1.1754944e-38, %v585
    %v587 = vsel %vm584, %v586, %v582
    %v588 = vmul.f32 1.0, %v587
    %v589 = vrcp.pop %v447
    %v590 = vmul.f32 %v447, %v589
    %v591 = vsub.f32 1.0, %v590
    %v592 = vmul.f32 %v589, %v591
    %v593 = vadd.f32 %v589, %v592
    %vm594 = vweird.f32 %v447
    %vm595 = vweird.f32 %v589
    %vm596 = vmor %vm594, %vm595
    %v597 = vsel %vm596, %v589, %v593
    %v598 = vand.u32 2147483647, %v447
    %vm599 = vcmp.eq.f32.partialorder %v598, 8.507059e+37
    %v600 = vand.u32 %v447, 2147483648
    %v601 = vor.u32 1.1754944e-38, %v600
    %v602 = vsel %vm599, %v601, %v597
    %v603 = vmul.f32 1.0, %v602
    %v604 = vrcp.pop %v448
    %v605 = vmul.f32 %v448, %v604
    %v606 = vsub.f32 1.0, %v605
    %v607 = vmul.f32 %v604, %v606
    %v608 = vadd.f32 %v604, %v607
    %vm609 = vweird.f32 %v448
    %vm610 = vweird.f32 %v604
    %vm611 = vmor %vm609, %vm610
    %v612 = vsel %vm611, %v604, %v608
    %v613 = vand.u32 2147483647, %v448
    %vm614 = vcmp.eq.f32.partialorder %v613, 8.507059e+37
    %v615 = vand.u32 %v448, 2147483648
    %v616 = vor.u32 1.1754944e-38, %v615
    %v617 = vsel %vm614, %v616, %v612
    %v618 = vmul.f32 1.0, %v617
    %v619 = vrcp.pop %v449
    %v620 = vmul.f32 %v449, %v619
    %v621 = vsub.f32 1.0, %v620
    %v622 = vmul.f32 %v619, %v621
    %v623 = vadd.f32 %v619, %v622
    %vm624 = vweird.f32 %v449
    %vm625 = vweird.f32 %v619
    %vm626 = vmor %vm624, %vm625
    %v627 = vsel %vm626, %v619, %v623
    %v628 = vand.u32 2147483647, %v449
    %vm629 = vcmp.eq.f32.partialorder %v628, 8.507059e+37
    %v630 = vand.u32 %v449, 2147483648
    %v631 = vor.u32 1.1754944e-38, %v630
    %v632 = vsel %vm629, %v631, %v627
    %v633 = vmul.f32 1.0, %v632
    %v634 = vrcp.pop %v450
    %v635 = vmul.f32 %v450, %v634
    %v636 = vsub.f32 1.0, %v635
    %v637 = vmul.f32 %v634, %v636
    %v638 = vadd.f32 %v634, %v637
    %vm639 = vweird.f32 %v450
    %vm640 = vweird.f32 %v634
    %vm641 = vmor %vm639, %vm640
    %v642 = vsel %vm641, %v634, %v638
    %v643 = vand.u32 2147483647, %v450
    %vm644 = vcmp.eq.f32.partialorder %v643, 8.507059e+37
    %v645 = vand.u32 %v450, 2147483648
    %v646 = vor.u32 1.1754944e-38, %v645
    %v647 = vsel %vm644, %v646, %v642
    %v648 = vmul.f32 1.0, %v647
    %v649 = vrcp.pop %v451
    %v650 = vmul.f32 %v451, %v649
    %v651 = vsub.f32 1.0, %v650
    %v652 = vmul.f32 %v649, %v651
    %v653 = vadd.f32 %v649, %v652
    %vm654 = vweird.f32 %v451
    %vm655 = vweird.f32 %v649
    %vm656 = vmor %vm654, %vm655
    %v657 = vsel %vm656, %v649, %v653
    %v658 = vand.u32 2147483647, %v451
    %vm659 = vcmp.eq.f32.partialorder %v658, 8.507059e+37
    %v660 = vand.u32 %v451, 2147483648
    %v661 = vor.u32 1.1754944e-38, %v660
    %v662 = vsel %vm659, %v661, %v657
    %v663 = vmul.f32 1.0, %v662
    %v664 = vrcp.pop %v452
    %v665 = vmul.f32 %v452, %v664
    %v666 = vsub.f32 1.0, %v665
    %v667 = vmul.f32 %v664, %v666
    %v668 = vadd.f32 %v664, %v667
    %vm669 = vweird.f32 %v452
    %vm670 = vweird.f32 %v664
    %vm671 = vmor %vm669, %vm670
    %v672 = vsel %vm671, %v664, %v668
    %v673 = vand.u32 2147483647, %v452
    %vm674 = vcmp.eq.f32.partialorder %v673, 8.507059e+37
    %v675 = vand.u32 %v452, 2147483648
    %v676 = vor.u32 1.1754944e-38, %v675
    %v677 = vsel %vm674, %v676, %v672
    %v678 = vmul.f32 1.0, %v677
    %v679 = vrcp.pop %v453
    %v680 = vmul.f32 %v453, %v679
    %v681 = vsub.f32 1.0, %v680
    %v682 = vmul.f32 %v679, %v681
    %v683 = vadd.f32 %v679, %v682
    %vm684 = vweird.f32 %v453
    %vm685 = vweird.f32 %v679
    %vm686 = vmor %vm684, %vm685
    %v687 = vsel %vm686, %v679, %v683
    %v688 = vand.u32 2147483647, %v453
    %vm689 = vcmp.eq.f32.partialorder %v688, 8.507059e+37
    %v690 = vand.u32 %v453, 2147483648
    %v691 = vor.u32 1.1754944e-38, %v690
    %v692 = vsel %vm689, %v691, %v687
    %v693 = vmul.f32 1.0, %v692
    %694 = vst [vmem:[#allocation8] sm:$0xff] %v468
    %695 = vst [vmem:[#allocation8 + $0x8] sm:$0xff] %v483
    %696 = vst [vmem:[#allocation8 + $0x10] sm:$0xff] %v498
    %697 = vst [vmem:[#allocation8 + $0x18] sm:$0xff] %v513
    %698 = vst [vmem:[#allocation8 + $0x20] sm:$0xff] %v528
    %699 = vst [vmem:[#allocation8 + $0x28] sm:$0xff] %v543
    %700 = vst [vmem:[#allocation8 + $0x30] sm:$0xff] %v558
    %701 = vst [vmem:[#allocation8 + $0x38] sm:$0xff] %v573
    %702 = vst [vmem:[#allocation8 + $0x40] sm:$0xff] %v588
    %703 = vst [vmem:[#allocation8 + $0x48] sm:$0xff] %v603
    %704 = vst [vmem:[#allocation8 + $0x50] sm:$0xff] %v618
    %705 = vst [vmem:[#allocation8 + $0x58] sm:$0xff] %v633
    %706 = vst [vmem:[#allocation8 + $0x60] sm:$0xff] %v648
    %707 = vst [vmem:[#allocation8 + $0x68] sm:$0xff] %v663
    %708 = vst [vmem:[#allocation8 + $0x70] sm:$0xff] %v678
    %709 = vst [vmem:[#allocation8 + $0x78] sm:$0xff] %v693
    // Predicated region
    $region34: #{tpu_custom_call.1} parent=1 // pred_check
      _
    $region35: #{tpu_custom_call.1} parent=1 // pred_check_branch
      %711 = sbr.rel (0) target = $region37
    $region36: #{tpu_custom_call.1} parent=1 // pred_region
      %713 = vsyncadd [#allocation4], 0
      %s714 = sshll.u32 [#allocation8], 4
      %s715 = int_to_ptr.vmem [resolvable:$true] %s714
      %s716 = sshll.u32 %s5, 4
      %s717 = int_to_ptr.hbm [resolvable:$true] %s716
      %722 = dma.vmem_to_hbm [thread:$0]  %s715, 2048, %s717, [#allocation4], 128, 128, 8
    $region37: #{tpu_custom_call.1} parent=1 // pred_fallthru
      _
    // Predicated region
    $region38: #{tpu_custom_call.1} parent=1 // pred_check
      _
    $region39: #{tpu_custom_call.1} parent=1 // pred_check_branch
      %724 = sbr.rel (0) target = $region41
    $region40: #{tpu_custom_call.1} parent=1 // pred_region
      %726 = dma.done [#allocation4], 2048
    $region41: #{tpu_custom_call.1} parent=1 // pred_fallthru
      _
    %727 = vsyncpa [#allocation3], 1
    %728 = vsyncpa [#allocation6], 1
    %729 = vsyncpa [#allocation4], 1

</llo_original>
